<compile_context>
chip_gen: v7x
topology: tpu7x:2x2x1
jax: 0.10.0
libtpu: 0.0.40
codegen_flags: <defaults>
</compile_context>

<pallas_src>
import functools

import jax
import jax.numpy as jnp
from jax import lax
from jax.experimental import pallas as pl
from jax.experimental.pallas import tpu as pltpu

_LN_EPS = 1e-6
# Explicit scoped-VMEM cap (review: do not rely on per-generation defaults;
# leaves headroom on v7x's 64 MiB physical VMEM).
_VMEM_LIMIT = 48 * 1024 * 1024

_ROW_TILES = (512, 256, 128, 64, 32, 16, 8)   # multiples of 8 (f32 sublane)
_FF_TILES = (1024, 512, 256, 128)             # multiples of 128 (lane)


def _pick_tile(n, candidates):
    """Largest candidate that divides n; fall back to the full extent (single block)."""
    for t in candidates:
        if t <= n and n % t == 0:
            return t
    return n


# ---------------------------------------------------------------------------
# Kernel 1: fused linear projection  y = x @ W + b   (used for the QKV linears)
# ---------------------------------------------------------------------------
def _linear_kernel(x_ref, w_ref, b_ref, o_ref):
    y = jnp.dot(x_ref[...], w_ref[...], preferred_element_type=jnp.float32)
    o_ref[...] = (y + b_ref[...]).astype(o_ref.dtype)


def _linear(x2d, w, b):
    n, d_in = x2d.shape
    d_out = w.shape[1]
    tn = _pick_tile(n, _ROW_TILES)
    itemsize = jnp.dtype(x2d.dtype).itemsize
    cost = pl.CostEstimate(
        flops=2 * n * d_in * d_out,
        transcendentals=0,
        bytes_accessed=(x2d.size + w.size + b.size + n * d_out) * itemsize,
    )
    # TODO(synk): tile d_in/d_out for very large d_model (weights kept whole here).
    return pl.pallas_call(
        _linear_kernel,
        out_shape=jax.ShapeDtypeStruct((n, d_out), x2d.dtype),
        grid_spec=pltpu.PrefetchScalarGridSpec(
            num_scalar_prefetch=0,
            grid=(n // tn,),
            in_specs=[
                pl.BlockSpec((tn, d_in), lambda i: (i, 0)),     # x row tile
                pl.BlockSpec((d_in, d_out), lambda i: (0, 0)),  # W (grid-invariant)
                pl.BlockSpec((1, d_out), lambda i: (0, 0)),     # b
            ],
            out_specs=pl.BlockSpec((tn, d_out), lambda i: (i, 0)),
        ),
        compiler_params=pltpu.CompilerParams(
            dimension_semantics=("parallel",),
            vmem_limit_bytes=_VMEM_LIMIT),
        cost_estimate=cost,
    )(x2d, w, b.reshape(1, d_out))


# ---------------------------------------------------------------------------
# Kernel 2: multi-head attention core (per batch element, heads unrolled)
# ---------------------------------------------------------------------------
def _mha_core_kernel(q_ref, k_ref, v_ref, bias_ref, o_ref, *, nhead, scale):
    # q/k/v refs: [nhead, S, dk]; bias ref: [S, S]; out ref: [nhead, S, dk]
    bias = bias_ref[...]
    for h in range(nhead):                      # static unroll over heads
        qh = q_ref[h].astype(jnp.float32)
        kh = k_ref[h].astype(jnp.float32)
        logits = lax.dot_general(qh, kh, (((1,), (1,)), ((), ())),
                                 preferred_element_type=jnp.float32)
        logits = logits * scale + bias
        m = jnp.max(logits, axis=-1, keepdims=True)
        p = jnp.exp(logits - m)
        p = p / jnp.sum(p, axis=-1, keepdims=True)
        ctx = jnp.dot(p.astype(v_ref.dtype), v_ref[h],
                      preferred_element_type=jnp.float32)
        o_ref[h] = ctx.astype(o_ref.dtype)


def _mha_core(q, k, v, bias):
    # q/k/v: [B, nhead, S, dk];  bias: [B, S, S] additive (-inf where masked)
    b, nh, s, dk = q.shape
    scale = 1.0 / float(dk) ** 0.5
    itemsize = jnp.dtype(q.dtype).itemsize
    cost = pl.CostEstimate(
        flops=4 * b * nh * s * s * dk,
        transcendentals=b * nh * s * s,
        bytes_accessed=(4 * q.size + bias.size) * itemsize,
    )
    # TODO(synk): flash-style tiling over the sequence axis for long S.
    return pl.pallas_call(
        functools.partial(_mha_core_kernel, nhead=nh, scale=scale),
        out_shape=jax.ShapeDtypeStruct((b, nh, s, dk), q.dtype),
        grid_spec=pltpu.PrefetchScalarGridSpec(
            num_scalar_prefetch=0,
            grid=(b,),
            in_specs=[
                pl.BlockSpec((None, nh, s, dk), lambda i: (i, 0, 0, 0)),
                pl.BlockSpec((None, nh, s, dk), lambda i: (i, 0, 0, 0)),
                pl.BlockSpec((None, nh, s, dk), lambda i: (i, 0, 0, 0)),
                pl.BlockSpec((None, s, s), lambda i: (i, 0, 0)),
            ],
            out_specs=pl.BlockSpec((None, nh, s, dk), lambda i: (i, 0, 0, 0)),
        ),
        compiler_params=pltpu.CompilerParams(
            dimension_semantics=("parallel",),
            vmem_limit_bytes=_VMEM_LIMIT),
        cost_estimate=cost,
    )(q, k, v, bias)


# ---------------------------------------------------------------------------
# Kernel 3: residual add + LayerNorm (AddNormWrapper, eps=1e-6)
# ---------------------------------------------------------------------------
def _add_norm_kernel(x_ref, y_ref, g_ref, b_ref, o_ref, *, eps):
    s = x_ref[...].astype(jnp.float32) + y_ref[...].astype(jnp.float32)
    mean = jnp.mean(s, axis=-1, keepdims=True)
    c = s - mean
    var = jnp.mean(c * c, axis=-1, keepdims=True)
    y = c * lax.rsqrt(var + eps)
    o_ref[...] = (y * g_ref[...] + b_ref[...]).astype(o_ref.dtype)


def _add_norm(x2d, y2d, gamma, beta):
    n, d = x2d.shape
    tn = _pick_tile(n, _ROW_TILES)
    return pl.pallas_call(
        functools.partial(_add_norm_kernel, eps=_LN_EPS),
        out_shape=jax.ShapeDtypeStruct((n, d), x2d.dtype),
        grid_spec=pltpu.PrefetchScalarGridSpec(
            num_scalar_prefetch=0,
            grid=(n // tn,),
            in_specs=[
                pl.BlockSpec((tn, d), lambda i: (i, 0)),
                pl.BlockSpec((tn, d), lambda i: (i, 0)),
                pl.BlockSpec((1, d), lambda i: (0, 0)),
                pl.BlockSpec((1, d), lambda i: (0, 0)),
            ],
            out_specs=pl.BlockSpec((tn, d), lambda i: (i, 0)),
        ),
        compiler_params=pltpu.CompilerParams(
            dimension_semantics=("parallel",),
            vmem_limit_bytes=_VMEM_LIMIT),
    )(x2d, y2d, gamma.reshape(1, d), beta.reshape(1, d))


# ---------------------------------------------------------------------------
# Kernel 4: FeedForward (Linear->ReLU->Linear) fused with residual add + LayerNorm.
# Grid = (row tiles, d_ff tiles); d_ff is the reduction axis ("arbitrary") with a
# VMEM f32 accumulator; bias2 + residual + LayerNorm applied at the last k-step.
# ---------------------------------------------------------------------------
def _ffn_add_norm_kernel(x_ref, w1_ref, b1_ref, w2_ref, b2_ref, g_ref, beta_ref,
                         o_ref, acc_ref, *, eps):
    k = pl.program_id(1)
    nk = pl.num_programs(1)

    @pl.when(k == 0)
    def _():
        acc_ref[...] = jnp.zeros_like(acc_ref)

    x = x_ref[...]
    h = jnp.dot(x, w1_ref[...], preferred_element_type=jnp.float32) + b1_ref[...]
    h = jnp.maximum(h, 0.0)                       # ReLU
    # TODO(synk): training-mode dropout on `h` via pltpu.prng_seed/prng_random_bits.
    acc_ref[...] += jnp.dot(h.astype(w2_ref.dtype), w2_ref[...],
                            preferred_element_type=jnp.float32)

    @pl.when(k == nk - 1)
    def _():
        ff = acc_ref[...] + b2_ref[...]
        s = x.astype(jnp.float32) + ff            # residual add (dropout = identity)
        mean = jnp.mean(s, axis=-1, keepdims=True)
        c = s - mean
        var = jnp.mean(c * c, axis=-1, keepdims=True)
        y = c * lax.rsqrt(var + eps)
        o_ref[...] = (y * g_ref[...] + beta_ref[...]).astype(o_ref.dtype)


def _ffn_add_norm(x2d, w1, b1, w2, b2, gamma, beta):
    n, d_model = x2d.shape
    d_ff = w1.shape[1]
    tn = _pick_tile(n, _ROW_TILES)
    tf = _pick_tile(d_ff, _FF_TILES)
    itemsize = jnp.dtype(x2d.dtype).itemsize
    cost = pl.CostEstimate(
        flops=4 * n * d_model * d_ff,
        transcendentals=n,                        # rsqrt in the LayerNorm epilogue
        bytes_accessed=(2 * x2d.size + w1.size + w2.size) * itemsize,
    )
    return pl.pallas_call(
        functools.partial(_ffn_add_norm_kernel, eps=_LN_EPS),
        out_shape=jax.ShapeDtypeStruct((n, d_model), x2d.dtype),
        grid_spec=pltpu.PrefetchScalarGridSpec(
            num_scalar_prefetch=0,
            grid=(n // tn, d_ff // tf),
            in_specs=[
                pl.BlockSpec((tn, d_model), lambda i, k: (i, 0)),    # x / residual
                pl.BlockSpec((d_model, tf), lambda i, k: (0, k)),    # W1 column tile
                pl.BlockSpec((1, tf), lambda i, k: (0, k)),          # b1 tile
                pl.BlockSpec((tf, d_model), lambda i, k: (k, 0)),    # W2 row tile
                pl.BlockSpec((1, d_model), lambda i, k: (0, 0)),     # b2
                pl.BlockSpec((1, d_model), lambda i, k: (0, 0)),     # LN gamma
                pl.BlockSpec((1, d_model), lambda i, k: (0, 0)),     # LN beta
            ],
            out_specs=pl.BlockSpec((tn, d_model), lambda i, k: (i, 0)),
            scratch_shapes=[pltpu.VMEM((tn, d_model), jnp.float32)],
        ),
        compiler_params=pltpu.CompilerParams(
            dimension_semantics=("parallel", "arbitrary"),
            vmem_limit_bytes=_VMEM_LIMIT),
        cost_estimate=cost,
    )(x2d, w1, b1.reshape(1, d_ff), w2, b2.reshape(1, d_model),
      gamma.reshape(1, d_model), beta.reshape(1, d_model))


# ---------------------------------------------------------------------------
# Module wrappers
# ---------------------------------------------------------------------------
def _multi_head_attention(x, wq, bq, wk, bk, wv, bv, attn_mask, nhead):
    b, s, d = x.shape
    dk = d // nhead
    n = b * s
    x2d = x.reshape(n, d)
    # Fuse the three projection matmuls into one kernel call.
    wqkv = jnp.concatenate([wq, wk, wv], axis=1)          # [d, 3d]
    bqkv = jnp.concatenate([bq, bk, bv], axis=0)          # [3d]
    qkv = _linear(x2d, wqkv, bqkv)                        # [n, 3d]
    qkv = qkv.reshape(b, s, 3, nhead, dk)
    qkv = jnp.transpose(qkv, (2, 0, 3, 1, 4))             # [3, b, nh, s, dk]
    q, k, v = qkv[0], qkv[1], qkv[2]
    if attn_mask is None:
        bias = jnp.zeros((b, s, s), jnp.float32)
    else:
        bias = jnp.where(attn_mask, -jnp.inf, 0.0).astype(jnp.float32)
    ctx = _mha_core(q, k, v, bias)                        # [b, nh, s, dk]
    # Head concat back to [b, s, d] (layout plumbing outside the kernel).
    return jnp.transpose(ctx, (0, 2, 1, 3)).reshape(b, s, d)


@functools.partial(jax.jit, static_argnames=("nhead",))
def transformer_encoder_layer(x, params, attn_mask, *, nhead):
    b, s, d = x.shape
    n = b * s
    attn = _multi_head_attention(
        x, params["wq"], params["bq"], params["wk"], params["bk"],
        params["wv"], params["bv"], attn_mask, nhead)
    # Sublayer 0: LN(x + dropout(MHA(x)))   (dropout = identity, inference)
    x1 = _add_norm(x.reshape(n, d), attn.reshape(n, d),
                   params["ln1_g"], params["ln1_b"])
    # Sublayer 1: LN(x1 + dropout(FFN(x1))) fused into one kernel.
    x2 = _ffn_add_norm(x1, params["w1"], params["b1"], params["w2"], params["b2"],
                       params["ln2_g"], params["ln2_b"])
    return x2.reshape(b, s, d)


# ---------------------------------------------------------------------------
# Pure-JAX reference for verification
# ---------------------------------------------------------------------------
def _reference_encoder_layer(x, params, attn_mask, nhead, eps=_LN_EPS):
    def layer_norm(v, g, b):
        mean = v.mean(-1, keepdims=True)
        var = ((v - mean) ** 2).mean(-1, keepdims=True)
        return (v - mean) / jnp.sqrt(var + eps) * g + b

    b, s, d = x.shape
    dk = d // nhead
    q = x @ params["wq"] + params["bq"]
    k = x @ params["wk"] + params["bk"]
    v = x @ params["wv"] + params["bv"]

    def split(t):
        return t.reshape(b, s, nhead, dk).transpose(0, 2, 1, 3)

    qh, kh, vh = split(q), split(k), split(v)
    logits = jnp.einsum("bhqd,bhkd->bhqk", qh, kh) / jnp.sqrt(dk)
    if attn_mask is not None:
        logits = logits + jnp.where(attn_mask, -jnp.inf, 0.0)[:, None]
    attn = jax.nn.softmax(logits, axis=-1)
    ctx = jnp.einsum("bhqk,bhkd->bhqd", attn, vh)
    ctx = ctx.transpose(0, 2, 1, 3).reshape(b, s, d)
    x1 = layer_norm(x + ctx, params["ln1_g"], params["ln1_b"])
    ff = jnp.maximum(x1 @ params["w1"] + params["b1"], 0.0) @ params["w2"] + params["b2"]
    return layer_norm(x1 + ff, params["ln2_g"], params["ln2_b"])


if __name__ == "__main__":
    B, S, d_model, nhead, d_ff = 2, 8, 32, 4, 64
    key = jax.random.PRNGKey(0)
    ks = jax.random.split(key, 15)

    def uniform(k, shape, fan_in):
        lim = 1.0 / (fan_in ** 0.5)
        return jax.random.uniform(k, shape, jnp.float32, -lim, lim)

    x = jax.random.normal(ks[0], (B, S, d_model), jnp.float32)
    params = dict(
        wq=uniform(ks[1], (d_model, d_model), d_model),
        bq=uniform(ks[2], (d_model,), d_model),
        wk=uniform(ks[3], (d_model, d_model), d_model),
        bk=uniform(ks[4], (d_model,), d_model),
        wv=uniform(ks[5], (d_model, d_model), d_model),
        bv=uniform(ks[6], (d_model,), d_model),
        ln1_g=1.0 + 0.1 * jax.random.normal(ks[7], (d_model,), jnp.float32),
        ln1_b=0.1 * jax.random.normal(ks[8], (d_model,), jnp.float32),
        w1=uniform(ks[9], (d_model, d_ff), d_model),
        b1=uniform(ks[10], (d_ff,), d_model),
        w2=uniform(ks[11], (d_ff, d_model), d_ff),
        b2=uniform(ks[12], (d_model,), d_ff),
        ln2_g=1.0 + 0.1 * jax.random.normal(ks[13], (d_model,), jnp.float32),
        ln2_b=0.1 * jax.random.normal(ks[14], (d_model,), jnp.float32),
    )
    attn_mask = jnp.zeros((B, S, S), dtype=jnp.bool_)   # no positions masked

    out = transformer_encoder_layer(x, params, attn_mask, nhead=nhead)
    out = jax.block_until_ready(out)

    ref = _reference_encoder_layer(x, params, attn_mask, nhead)
    assert out.shape == (B, S, d_model)
    err = jnp.max(jnp.abs(out - ref))
    assert jnp.allclose(out, ref, atol=1e-4, rtol=1e-4), f"mismatch vs reference, max err {err}"

    print("KERNEL_OK")
</pallas_src>

<mosaic_0001>
module attributes {stable_mosaic.version = 11 : i64} {
  func.func @_linear_kernel(%arg0: i32, %arg1: memref<16x32xf32, #tpu.memory_space<vmem>>, %arg2: memref<32x96xf32, #tpu.memory_space<vmem>>, %arg3: memref<1x96xf32, #tpu.memory_space<vmem>>, %arg4: memref<16x96xf32, #tpu.memory_space<vmem>>) attributes {dimension_semantics = [#tpu.dimension_semantics<parallel>], iteration_bounds = array<i64: 1>, scalar_prefetch = 0 : i64, scratch_operands = 0 : i64, tpu.core_type = #tpu.core_type<tc>, window_params = [{transform_indices = @transform_0, window_bounds = array<i64: 16, 32>}, {pipeline_mode = #tpu.pipeline_mode<synchronous>, transform_indices = @transform_1, window_bounds = array<i64: 32, 96>}, {pipeline_mode = #tpu.pipeline_mode<synchronous>, transform_indices = @transform_2, window_bounds = array<i64: 1, 96>}, {transform_indices = @transform_3, window_bounds = array<i64: 16, 96>}]} {
    %c0 = arith.constant 0 : index
    %c0_0 = arith.constant 0 : index
    %0 = vector.load %arg1[%c0, %c0_0] : memref<16x32xf32, #tpu.memory_space<vmem>>, vector<16x32xf32>
    %c0_1 = arith.constant 0 : index
    %c0_2 = arith.constant 0 : index
    %1 = vector.load %arg2[%c0_1, %c0_2] : memref<32x96xf32, #tpu.memory_space<vmem>>, vector<32x96xf32>
    %cst = arith.constant dense<0.000000e+00> : vector<16x96xf32>
    %2 = tpu.matmul %0, %1, %cst {dimension_numbers = #tpu.dot_dimension_numbers<[1], [0], [0], [1], [0, 0, 1, 1], [], []>} : vector<16x32xf32>, vector<32x96xf32>, vector<16x96xf32> -> vector<16x96xf32>
    %c0_3 = arith.constant 0 : index
    %c0_4 = arith.constant 0 : index
    %3 = vector.load %arg3[%c0_3, %c0_4] : memref<1x96xf32, #tpu.memory_space<vmem>>, vector<1x96xf32>
    %4 = vector.broadcast %3 : vector<1x96xf32> to vector<16x96xf32>
    %5 = arith.addf %2, %4 : vector<16x96xf32>
    %c0_5 = arith.constant 0 : index
    %c0_6 = arith.constant 0 : index
    %6 = vector.load %arg4[%c0_5, %c0_6] : memref<16x96xf32, #tpu.memory_space<vmem>>, vector<16x96xf32>
    tpu.vector_store %arg4[%c0_5, %c0_6], %5 {strides = array<i32>} : memref<16x96xf32, #tpu.memory_space<vmem>>, vector<16x96xf32>,
    return
  }
  func.func @transform_0(%arg0: i32) -> (i32, i32) {
    %c0_i32 = arith.constant 0 : i32
    %c0_i32_0 = arith.constant 0 : i32
    return %arg0, %c0_i32 : i32, i32
  }
  func.func @transform_1(%arg0: i32) -> (i32, i32) {
    %c0_i32 = arith.constant 0 : i32
    %c0_i32_0 = arith.constant 0 : i32
    %c0_i32_1 = arith.constant 0 : i32
    return %c0_i32, %c0_i32_0 : i32, i32
  }
  func.func @transform_2(%arg0: i32) -> (i32, i32) {
    %c0_i32 = arith.constant 0 : i32
    %c0_i32_0 = arith.constant 0 : i32
    %c0_i32_1 = arith.constant 0 : i32
    return %c0_i32, %c0_i32_0 : i32, i32
  }
  func.func @transform_3(%arg0: i32) -> (i32, i32) {
    %c0_i32 = arith.constant 0 : i32
    %c0_i32_0 = arith.constant 0 : i32
    return %arg0, %c0_i32 : i32, i32
  }
}

module attributes {stable_mosaic.version = 11 : i64} {
  func.func @_mha_core_kernel(%arg0: i32, %arg1: memref<1x4x8x8xf32, #tpu.memory_space<vmem>>, %arg2: memref<1x4x8x8xf32, #tpu.memory_space<vmem>>, %arg3: memref<1x4x8x8xf32, #tpu.memory_space<vmem>>, %arg4: memref<1x8x8xf32, #tpu.memory_space<vmem>>, %arg5: memref<1x4x8x8xf32, #tpu.memory_space<vmem>>) attributes {dimension_semantics = [#tpu.dimension_semantics<parallel>], iteration_bounds = array<i64: 2>, scalar_prefetch = 0 : i64, scratch_operands = 0 : i64, tpu.core_type = #tpu.core_type<tc>, window_params = [{transform_indices = @transform_0, window_bounds = array<i64: 1, 4, 8, 8>}, {transform_indices = @transform_1, window_bounds = array<i64: 1, 4, 8, 8>}, {transform_indices = @transform_2, window_bounds = array<i64: 1, 4, 8, 8>}, {transform_indices = @transform_3, window_bounds = array<i64: 1, 8, 8>}, {transform_indices = @transform_4, window_bounds = array<i64: 1, 4, 8, 8>}]} {
    %c0 = arith.constant 0 : index
    %c0_0 = arith.constant 0 : index
    %c0_1 = arith.constant 0 : index
    %0 = vector.load %arg4[%c0, %c0_0, %c0_1] : memref<1x8x8xf32, #tpu.memory_space<vmem>>, vector<1x8x8xf32>
    %1 = vector.shape_cast %0 : vector<1x8x8xf32> to vector<8x8xf32>
    %c0_2 = arith.constant 0 : index
    %c0_3 = arith.constant 0 : index
    %c0_4 = arith.constant 0 : index
    %c0_5 = arith.constant 0 : index
    %2 = vector.load %arg1[%c0_2, %c0_3, %c0_4, %c0_5] : memref<1x4x8x8xf32, #tpu.memory_space<vmem>>, vector<1x1x8x8xf32>
    %3 = vector.shape_cast %2 : vector<1x1x8x8xf32> to vector<8x8xf32>
    %c0_6 = arith.constant 0 : index
    %c0_7 = arith.constant 0 : index
    %c0_8 = arith.constant 0 : index
    %c0_9 = arith.constant 0 : index
    %4 = vector.load %arg2[%c0_6, %c0_7, %c0_8, %c0_9] : memref<1x4x8x8xf32, #tpu.memory_space<vmem>>, vector<1x1x8x8xf32>
    %5 = vector.shape_cast %4 : vector<1x1x8x8xf32> to vector<8x8xf32>
    %cst = arith.constant dense<0.000000e+00> : vector<8x8xf32>
    %6 = tpu.matmul %3, %5, %cst {dimension_numbers = #tpu.dot_dimension_numbers<[1], [1], [0], [0], [0, 0, 1, 0], [], []>} : vector<8x8xf32>, vector<8x8xf32>, vector<8x8xf32> -> vector<8x8xf32>
    %cst_10 = arith.constant 0.353553385 : f32
    %7 = vector.broadcast %cst_10 : f32 to vector<8x8xf32>
    %8 = arith.mulf %6, %7 : vector<8x8xf32>
    %9 = arith.addf %8, %1 : vector<8x8xf32>
    %cst_11 = arith.constant dense<0xFF800000> : vector<8xf32>
    %10 = vector.multi_reduction <maximumf>, %9, %cst_11 [1] : vector<8x8xf32> to vector<8xf32>
    %11 = vector.shape_cast %10 : vector<8xf32> to vector<8x1xf32>
    %12 = vector.broadcast %11 : vector<8x1xf32> to vector<8x8xf32>
    %13 = arith.subf %9, %12 : vector<8x8xf32>
    %14 = math.exp %13 : vector<8x8xf32>
    %cst_12 = arith.constant dense<0.000000e+00> : vector<8xf32>
    %15 = vector.multi_reduction <add>, %14, %cst_12 [1] : vector<8x8xf32> to vector<8xf32>
    %16 = vector.shape_cast %15 : vector<8xf32> to vector<8x1xf32>
    %17 = vector.broadcast %16 : vector<8x1xf32> to vector<8x8xf32>
    %18 = arith.divf %14, %17 : vector<8x8xf32>
    %c0_13 = arith.constant 0 : index
    %c0_14 = arith.constant 0 : index
    %c0_15 = arith.constant 0 : index
    %c0_16 = arith.constant 0 : index
    %19 = vector.load %arg3[%c0_13, %c0_14, %c0_15, %c0_16] : memref<1x4x8x8xf32, #tpu.memory_space<vmem>>, vector<1x1x8x8xf32>
    %20 = vector.shape_cast %19 : vector<1x1x8x8xf32> to vector<8x8xf32>
    %cst_17 = arith.constant dense<0.000000e+00> : vector<8x8xf32>
    %21 = tpu.matmul %18, %20, %cst_17 {dimension_numbers = #tpu.dot_dimension_numbers<[1], [0], [0], [1], [0, 0, 1, 1], [], []>} : vector<8x8xf32>, vector<8x8xf32>, vector<8x8xf32> -> vector<8x8xf32>
    %c0_18 = arith.constant 0 : index
    %c0_19 = arith.constant 0 : index
    %c0_20 = arith.constant 0 : index
    %c0_21 = arith.constant 0 : index
    %22 = vector.load %arg5[%c0_18, %c0_19, %c0_20, %c0_21] : memref<1x4x8x8xf32, #tpu.memory_space<vmem>>, vector<1x1x8x8xf32>
    %23 = vector.shape_cast %22 : vector<1x1x8x8xf32> to vector<8x8xf32>
    %24 = vector.shape_cast %21 : vector<8x8xf32> to vector<1x1x8x8xf32>
    tpu.vector_store %arg5[%c0_18, %c0_19, %c0_20, %c0_21], %24 {strides = array<i32>} : memref<1x4x8x8xf32, #tpu.memory_space<vmem>>, vector<1x1x8x8xf32>,
    %c0_22 = arith.constant 0 : index
    %c1 = arith.constant 1 : index
    %c0_23 = arith.constant 0 : index
    %c0_24 = arith.constant 0 : index
    %25 = vector.load %arg1[%c0_22, %c1, %c0_23, %c0_24] : memref<1x4x8x8xf32, #tpu.memory_space<vmem>>, vector<1x1x8x8xf32>
    %26 = vector.shape_cast %25 : vector<1x1x8x8xf32> to vector<8x8xf32>
    %c0_25 = arith.constant 0 : index
    %c1_26 = arith.constant 1 : index
    %c0_27 = arith.constant 0 : index
    %c0_28 = arith.constant 0 : index
    %27 = vector.load %arg2[%c0_25, %c1_26, %c0_27, %c0_28] : memref<1x4x8x8xf32, #tpu.memory_space<vmem>>, vector<1x1x8x8xf32>
    %28 = vector.shape_cast %27 : vector<1x1x8x8xf32> to vector<8x8xf32>
    %cst_29 = arith.constant dense<0.000000e+00> : vector<8x8xf32>
    %29 = tpu.matmul %26, %28, %cst_29 {dimension_numbers = #tpu.dot_dimension_numbers<[1], [1], [0], [0], [0, 0, 1, 0], [], []>} : vector<8x8xf32>, vector<8x8xf32>, vector<8x8xf32> -> vector<8x8xf32>
    %cst_30 = arith.constant 0.353553385 : f32
    %30 = vector.broadcast %cst_30 : f32 to vector<8x8xf32>
    %31 = arith.mulf %29, %30 : vector<8x8xf32>
    %32 = arith.addf %31, %1 : vector<8x8xf32>
    %cst_31 = arith.constant dense<0xFF800000> : vector<8xf32>
    %33 = vector.multi_reduction <maximumf>, %32, %cst_31 [1] : vector<8x8xf32> to vector<8xf32>
    %34 = vector.shape_cast %33 : vector<8xf32> to vector<8x1xf32>
    %35 = vector.broadcast %34 : vector<8x1xf32> to vector<8x8xf32>
    %36 = arith.subf %32, %35 : vector<8x8xf32>
    %37 = math.exp %36 : vector<8x8xf32>
    %cst_32 = arith.constant dense<0.000000e+00> : vector<8xf32>
    %38 = vector.multi_reduction <add>, %37, %cst_32 [1] : vector<8x8xf32> to vector<8xf32>
    %39 = vector.shape_cast %38 : vector<8xf32> to vector<8x1xf32>
    %40 = vector.broadcast %39 : vector<8x1xf32> to vector<8x8xf32>
    %41 = arith.divf %37, %40 : vector<8x8xf32>
    %c0_33 = arith.constant 0 : index
    %c1_34 = arith.constant 1 : index
    %c0_35 = arith.constant 0 : index
    %c0_36 = arith.constant 0 : index
    %42 = vector.load %arg3[%c0_33, %c1_34, %c0_35, %c0_36] : memref<1x4x8x8xf32, #tpu.memory_space<vmem>>, vector<1x1x8x8xf32>
    %43 = vector.shape_cast %42 : vector<1x1x8x8xf32> to vector<8x8xf32>
    %cst_37 = arith.constant dense<0.000000e+00> : vector<8x8xf32>
    %44 = tpu.matmul %41, %43, %cst_37 {dimension_numbers = #tpu.dot_dimension_numbers<[1], [0], [0], [1], [0, 0, 1, 1], [], []>} : vector<8x8xf32>, vector<8x8xf32>, vector<8x8xf32> -> vector<8x8xf32>
    %c0_38 = arith.constant 0 : index
    %c1_39 = arith.constant 1 : index
    %c0_40 = arith.constant 0 : index
    %c0_41 = arith.constant 0 : index
    %45 = vector.load %arg5[%c0_38, %c1_39, %c0_40, %c0_41] : memref<1x4x8x8xf32, #tpu.memory_space<vmem>>, vector<1x1x8x8xf32>
    %46 = vector.shape_cast %45 : vector<1x1x8x8xf32> to vector<8x8xf32>
    %47 = vector.shape_cast %44 : vector<8x8xf32> to vector<1x1x8x8xf32>
    tpu.vector_store %arg5[%c0_38, %c1_39, %c0_40, %c0_41], %47 {strides = array<i32>} : memref<1x4x8x8xf32, #tpu.memory_space<vmem>>, vector<1x1x8x8xf32>,
    %c0_42 = arith.constant 0 : index
    %c2 = arith.constant 2 : index
    %c0_43 = arith.constant 0 : index
    %c0_44 = arith.constant 0 : index
    %48 = vector.load %arg1[%c0_42, %c2, %c0_43, %c0_44] : memref<1x4x8x8xf32, #tpu.memory_space<vmem>>, vector<1x1x8x8xf32>
    %49 = vector.shape_cast %48 : vector<1x1x8x8xf32> to vector<8x8xf32>
    %c0_45 = arith.constant 0 : index
    %c2_46 = arith.constant 2 : index
    %c0_47 = arith.constant 0 : index
    %c0_48 = arith.constant 0 : index
    %50 = vector.load %arg2[%c0_45, %c2_46, %c0_47, %c0_48] : memref<1x4x8x8xf32, #tpu.memory_space<vmem>>, vector<1x1x8x8xf32>
    %51 = vector.shape_cast %50 : vector<1x1x8x8xf32> to vector<8x8xf32>
    %cst_49 = arith.constant dense<0.000000e+00> : vector<8x8xf32>
    %52 = tpu.matmul %49, %51, %cst_49 {dimension_numbers = #tpu.dot_dimension_numbers<[1], [1], [0], [0], [0, 0, 1, 0], [], []>} : vector<8x8xf32>, vector<8x8xf32>, vector<8x8xf32> -> vector<8x8xf32>
    %cst_50 = arith.constant 0.353553385 : f32
    %53 = vector.broadcast %cst_50 : f32 to vector<8x8xf32>
    %54 = arith.mulf %52, %53 : vector<8x8xf32>
    %55 = arith.addf %54, %1 : vector<8x8xf32>
    %cst_51 = arith.constant dense<0xFF800000> : vector<8xf32>
    %56 = vector.multi_reduction <maximumf>, %55, %cst_51 [1] : vector<8x8xf32> to vector<8xf32>
    %57 = vector.shape_cast %56 : vector<8xf32> to vector<8x1xf32>
    %58 = vector.broadcast %57 : vector<8x1xf32> to vector<8x8xf32>
    %59 = arith.subf %55, %58 : vector<8x8xf32>
    %60 = math.exp %59 : vector<8x8xf32>
    %cst_52 = arith.constant dense<0.000000e+00> : vector<8xf32>
    %61 = vector.multi_reduction <add>, %60, %cst_52 [1] : vector<8x8xf32> to vector<8xf32>
    %62 = vector.shape_cast %61 : vector<8xf32> to vector<8x1xf32>
    %63 = vector.broadcast %62 : vector<8x1xf32> to vector<8x8xf32>
    %64 = arith.divf %60, %63 : vector<8x8xf32>
    %c0_53 = arith.constant 0 : index
    %c2_54 = arith.constant 2 : index
    %c0_55 = arith.constant 0 : index
    %c0_56 = arith.constant 0 : index
    %65 = vector.load %arg3[%c0_53, %c2_54, %c0_55, %c0_56] : memref<1x4x8x8xf32, #tpu.memory_space<vmem>>, vector<1x1x8x8xf32>
    %66 = vector.shape_cast %65 : vector<1x1x8x8xf32> to vector<8x8xf32>
    %cst_57 = arith.constant dense<0.000000e+00> : vector<8x8xf32>
    %67 = tpu.matmul %64, %66, %cst_57 {dimension_numbers = #tpu.dot_dimension_numbers<[1], [0], [0], [1], [0, 0, 1, 1], [], []>} : vector<8x8xf32>, vector<8x8xf32>, vector<8x8xf32> -> vector<8x8xf32>
    %c0_58 = arith.constant 0 : index
    %c2_59 = arith.constant 2 : index
    %c0_60 = arith.constant 0 : index
    %c0_61 = arith.constant 0 : index
    %68 = vector.load %arg5[%c0_58, %c2_59, %c0_60, %c0_61] : memref<1x4x8x8xf32, #tpu.memory_space<vmem>>, vector<1x1x8x8xf32>
    %69 = vector.shape_cast %68 : vector<1x1x8x8xf32> to vector<8x8xf32>
    %70 = vector.shape_cast %67 : vector<8x8xf32> to vector<1x1x8x8xf32>
    tpu.vector_store %arg5[%c0_58, %c2_59, %c0_60, %c0_61], %70 {strides = array<i32>} : memref<1x4x8x8xf32, #tpu.memory_space<vmem>>, vector<1x1x8x8xf32>,
    %c0_62 = arith.constant 0 : index
    %c3 = arith.constant 3 : index
    %c0_63 = arith.constant 0 : index
    %c0_64 = arith.constant 0 : index
    %71 = vector.load %arg1[%c0_62, %c3, %c0_63, %c0_64] : memref<1x4x8x8xf32, #tpu.memory_space<vmem>>, vector<1x1x8x8xf32>
    %72 = vector.shape_cast %71 : vector<1x1x8x8xf32> to vector<8x8xf32>
    %c0_65 = arith.constant 0 : index
    %c3_66 = arith.constant 3 : index
    %c0_67 = arith.constant 0 : index
    %c0_68 = arith.constant 0 : index
    %73 = vector.load %arg2[%c0_65, %c3_66, %c0_67, %c0_68] : memref<1x4x8x8xf32, #tpu.memory_space<vmem>>, vector<1x1x8x8xf32>
    %74 = vector.shape_cast %73 : vector<1x1x8x8xf32> to vector<8x8xf32>
    %cst_69 = arith.constant dense<0.000000e+00> : vector<8x8xf32>
    %75 = tpu.matmul %72, %74, %cst_69 {dimension_numbers = #tpu.dot_dimension_numbers<[1], [1], [0], [0], [0, 0, 1, 0], [], []>} : vector<8x8xf32>, vector<8x8xf32>, vector<8x8xf32> -> vector<8x8xf32>
    %cst_70 = arith.constant 0.353553385 : f32
    %76 = vector.broadcast %cst_70 : f32 to vector<8x8xf32>
    %77 = arith.mulf %75, %76 : vector<8x8xf32>
    %78 = arith.addf %77, %1 : vector<8x8xf32>
    %cst_71 = arith.constant dense<0xFF800000> : vector<8xf32>
    %79 = vector.multi_reduction <maximumf>, %78, %cst_71 [1] : vector<8x8xf32> to vector<8xf32>
    %80 = vector.shape_cast %79 : vector<8xf32> to vector<8x1xf32>
    %81 = vector.broadcast %80 : vector<8x1xf32> to vector<8x8xf32>
    %82 = arith.subf %78, %81 : vector<8x8xf32>
    %83 = math.exp %82 : vector<8x8xf32>
    %cst_72 = arith.constant dense<0.000000e+00> : vector<8xf32>
    %84 = vector.multi_reduction <add>, %83, %cst_72 [1] : vector<8x8xf32> to vector<8xf32>
    %85 = vector.shape_cast %84 : vector<8xf32> to vector<8x1xf32>
    %86 = vector.broadcast %85 : vector<8x1xf32> to vector<8x8xf32>
    %87 = arith.divf %83, %86 : vector<8x8xf32>
    %c0_73 = arith.constant 0 : index
    %c3_74 = arith.constant 3 : index
    %c0_75 = arith.constant 0 : index
    %c0_76 = arith.constant 0 : index
    %88 = vector.load %arg3[%c0_73, %c3_74, %c0_75, %c0_76] : memref<1x4x8x8xf32, #tpu.memory_space<vmem>>, vector<1x1x8x8xf32>
    %89 = vector.shape_cast %88 : vector<1x1x8x8xf32> to vector<8x8xf32>
    %cst_77 = arith.constant dense<0.000000e+00> : vector<8x8xf32>
    %90 = tpu.matmul %87, %89, %cst_77 {dimension_numbers = #tpu.dot_dimension_numbers<[1], [0], [0], [1], [0, 0, 1, 1], [], []>} : vector<8x8xf32>, vector<8x8xf32>, vector<8x8xf32> -> vector<8x8xf32>
    %c0_78 = arith.constant 0 : index
    %c3_79 = arith.constant 3 : index
    %c0_80 = arith.constant 0 : index
    %c0_81 = arith.constant 0 : index
    %91 = vector.load %arg5[%c0_78, %c3_79, %c0_80, %c0_81] : memref<1x4x8x8xf32, #tpu.memory_space<vmem>>, vector<1x1x8x8xf32>
    %92 = vector.shape_cast %91 : vector<1x1x8x8xf32> to vector<8x8xf32>
    %93 = vector.shape_cast %90 : vector<8x8xf32> to vector<1x1x8x8xf32>
    tpu.vector_store %arg5[%c0_78, %c3_79, %c0_80, %c0_81], %93 {strides = array<i32>} : memref<1x4x8x8xf32, #tpu.memory_space<vmem>>, vector<1x1x8x8xf32>,
    return
  }
  func.func @transform_0(%arg0: i32) -> (i32, i32, i32, i32) {
    %c0_i32 = arith.constant 0 : i32
    %c0_i32_0 = arith.constant 0 : i32
    %c0_i32_1 = arith.constant 0 : i32
    %c0_i32_2 = arith.constant 0 : i32
    return %arg0, %c0_i32, %c0_i32_0, %c0_i32_1 : i32, i32, i32, i32
  }
  func.func @transform_1(%arg0: i32) -> (i32, i32, i32, i32) {
    %c0_i32 = arith.constant 0 : i32
    %c0_i32_0 = arith.constant 0 : i32
    %c0_i32_1 = arith.constant 0 : i32
    %c0_i32_2 = arith.constant 0 : i32
    return %arg0, %c0_i32, %c0_i32_0, %c0_i32_1 : i32, i32, i32, i32
  }
  func.func @transform_2(%arg0: i32) -> (i32, i32, i32, i32) {
    %c0_i32 = arith.constant 0 : i32
    %c0_i32_0 = arith.constant 0 : i32
    %c0_i32_1 = arith.constant 0 : i32
    %c0_i32_2 = arith.constant 0 : i32
    return %arg0, %c0_i32, %c0_i32_0, %c0_i32_1 : i32, i32, i32, i32
  }
  func.func @transform_3(%arg0: i32) -> (i32, i32, i32) {
    %c0_i32 = arith.constant 0 : i32
    %c0_i32_0 = arith.constant 0 : i32
    %c0_i32_1 = arith.constant 0 : i32
    return %arg0, %c0_i32, %c0_i32_0 : i32, i32, i32
  }
  func.func @transform_4(%arg0: i32) -> (i32, i32, i32, i32) {
    %c0_i32 = arith.constant 0 : i32
    %c0_i32_0 = arith.constant 0 : i32
    %c0_i32_1 = arith.constant 0 : i32
    %c0_i32_2 = arith.constant 0 : i32
    return %arg0, %c0_i32, %c0_i32_0, %c0_i32_1 : i32, i32, i32, i32
  }
}

module attributes {stable_mosaic.version = 11 : i64} {
  func.func @_add_norm_kernel(%arg0: i32, %arg1: memref<16x32xf32, #tpu.memory_space<vmem>>, %arg2: memref<16x32xf32, #tpu.memory_space<vmem>>, %arg3: memref<1x32xf32, #tpu.memory_space<vmem>>, %arg4: memref<1x32xf32, #tpu.memory_space<vmem>>, %arg5: memref<16x32xf32, #tpu.memory_space<vmem>>) attributes {dimension_semantics = [#tpu.dimension_semantics<parallel>], iteration_bounds = array<i64: 1>, scalar_prefetch = 0 : i64, scratch_operands = 0 : i64, tpu.core_type = #tpu.core_type<tc>, window_params = [{transform_indices = @transform_0, window_bounds = array<i64: 16, 32>}, {transform_indices = @transform_1, window_bounds = array<i64: 16, 32>}, {pipeline_mode = #tpu.pipeline_mode<synchronous>, transform_indices = @transform_2, window_bounds = array<i64: 1, 32>}, {pipeline_mode = #tpu.pipeline_mode<synchronous>, transform_indices = @transform_3, window_bounds = array<i64: 1, 32>}, {transform_indices = @transform_4, window_bounds = array<i64: 16, 32>}]} {
    %c0 = arith.constant 0 : index
    %c0_0 = arith.constant 0 : index
    %0 = vector.load %arg1[%c0, %c0_0] : memref<16x32xf32, #tpu.memory_space<vmem>>, vector<16x32xf32>
    %c0_1 = arith.constant 0 : index
    %c0_2 = arith.constant 0 : index
    %1 = vector.load %arg2[%c0_1, %c0_2] : memref<16x32xf32, #tpu.memory_space<vmem>>, vector<16x32xf32>
    %2 = arith.addf %0, %1 : vector<16x32xf32>
    %cst = arith.constant dense<0.000000e+00> : vector<16xf32>
    %3 = vector.multi_reduction <add>, %2, %cst [1] : vector<16x32xf32> to vector<16xf32>
    %4 = vector.shape_cast %3 : vector<16xf32> to vector<16x1xf32>
    %cst_3 = arith.constant 3.200000e+01 : f32
    %5 = vector.broadcast %cst_3 : f32 to vector<16x1xf32>
    %6 = arith.divf %4, %5 : vector<16x1xf32>
    %7 = vector.broadcast %6 : vector<16x1xf32> to vector<16x32xf32>
    %8 = arith.subf %2, %7 : vector<16x32xf32>
    %9 = arith.mulf %8, %8 : vector<16x32xf32>
    %cst_4 = arith.constant dense<0.000000e+00> : vector<16xf32>
    %10 = vector.multi_reduction <add>, %9, %cst_4 [1] : vector<16x32xf32> to vector<16xf32>
    %11 = vector.shape_cast %10 : vector<16xf32> to vector<16x1xf32>
    %cst_5 = arith.constant 3.200000e+01 : f32
    %12 = vector.broadcast %cst_5 : f32 to vector<16x1xf32>
    %13 = arith.divf %11, %12 : vector<16x1xf32>
    %cst_6 = arith.constant 9.99999997E-7 : f32
    %14 = vector.broadcast %cst_6 : f32 to vector<16x1xf32>
    %15 = arith.addf %13, %14 : vector<16x1xf32>
    %16 = math.rsqrt %15 : vector<16x1xf32>
    %17 = vector.broadcast %16 : vector<16x1xf32> to vector<16x32xf32>
    %18 = arith.mulf %8, %17 : vector<16x32xf32>
    %c0_7 = arith.constant 0 : index
    %c0_8 = arith.constant 0 : index
    %19 = vector.load %arg3[%c0_7, %c0_8] : memref<1x32xf32, #tpu.memory_space<vmem>>, vector<1x32xf32>
    %20 = vector.broadcast %19 : vector<1x32xf32> to vector<16x32xf32>
    %21 = arith.mulf %18, %20 : vector<16x32xf32>
    %c0_9 = arith.constant 0 : index
    %c0_10 = arith.constant 0 : index
    %22 = vector.load %arg4[%c0_9, %c0_10] : memref<1x32xf32, #tpu.memory_space<vmem>>, vector<1x32xf32>
    %23 = vector.broadcast %22 : vector<1x32xf32> to vector<16x32xf32>
    %24 = arith.addf %21, %23 : vector<16x32xf32>
    %c0_11 = arith.constant 0 : index
    %c0_12 = arith.constant 0 : index
    %25 = vector.load %arg5[%c0_11, %c0_12] : memref<16x32xf32, #tpu.memory_space<vmem>>, vector<16x32xf32>
    tpu.vector_store %arg5[%c0_11, %c0_12], %24 {strides = array<i32>} : memref<16x32xf32, #tpu.memory_space<vmem>>, vector<16x32xf32>,
    return
  }
  func.func @transform_0(%arg0: i32) -> (i32, i32) {
    %c0_i32 = arith.constant 0 : i32
    %c0_i32_0 = arith.constant 0 : i32
    return %arg0, %c0_i32 : i32, i32
  }
  func.func @transform_1(%arg0: i32) -> (i32, i32) {
    %c0_i32 = arith.constant 0 : i32
    %c0_i32_0 = arith.constant 0 : i32
    return %arg0, %c0_i32 : i32, i32
  }
  func.func @transform_2(%arg0: i32) -> (i32, i32) {
    %c0_i32 = arith.constant 0 : i32
    %c0_i32_0 = arith.constant 0 : i32
    %c0_i32_1 = arith.constant 0 : i32
    return %c0_i32, %c0_i32_0 : i32, i32
  }
  func.func @transform_3(%arg0: i32) -> (i32, i32) {
    %c0_i32 = arith.constant 0 : i32
    %c0_i32_0 = arith.constant 0 : i32
    %c0_i32_1 = arith.constant 0 : i32
    return %c0_i32, %c0_i32_0 : i32, i32
  }
  func.func @transform_4(%arg0: i32) -> (i32, i32) {
    %c0_i32 = arith.constant 0 : i32
    %c0_i32_0 = arith.constant 0 : i32
    return %arg0, %c0_i32 : i32, i32
  }
}

module attributes {stable_mosaic.version = 11 : i64} {
  func.func @_ffn_add_norm_kernel(%arg0: i32, %arg1: i32, %arg2: memref<16x32xf32, #tpu.memory_space<vmem>>, %arg3: memref<32x64xf32, #tpu.memory_space<vmem>>, %arg4: memref<1x64xf32, #tpu.memory_space<vmem>>, %arg5: memref<64x32xf32, #tpu.memory_space<vmem>>, %arg6: memref<1x32xf32, #tpu.memory_space<vmem>>, %arg7: memref<1x32xf32, #tpu.memory_space<vmem>>, %arg8: memref<1x32xf32, #tpu.memory_space<vmem>>, %arg9: memref<16x32xf32, #tpu.memory_space<vmem>>, %arg10: memref<16x32xf32, #tpu.memory_space<vmem>>) attributes {dimension_semantics = [#tpu.dimension_semantics<parallel>, #tpu.dimension_semantics<arbitrary>], iteration_bounds = array<i64: 1, 1>, scalar_prefetch = 0 : i64, scratch_operands = 1 : i64, tpu.core_type = #tpu.core_type<tc>, window_params = [{transform_indices = @transform_0, window_bounds = array<i64: 16, 32>}, {transform_indices = @transform_1, window_bounds = array<i64: 32, 64>}, {transform_indices = @transform_2, window_bounds = array<i64: 1, 64>}, {transform_indices = @transform_3, window_bounds = array<i64: 64, 32>}, {pipeline_mode = #tpu.pipeline_mode<synchronous>, transform_indices = @transform_4, window_bounds = array<i64: 1, 32>}, {pipeline_mode = #tpu.pipeline_mode<synchronous>, transform_indices = @transform_5, window_bounds = array<i64: 1, 32>}, {pipeline_mode = #tpu.pipeline_mode<synchronous>, transform_indices = @transform_6, window_bounds = array<i64: 1, 32>}, {transform_indices = @transform_7, window_bounds = array<i64: 16, 32>}]} {
    %c0_i32 = arith.constant 0 : i32
    %0 = arith.cmpi eq, %arg1, %c0_i32 : i32
    %1 = arith.extui %0 : i1 to i32
    %c0_i32_0 = arith.constant 0 : i32
    %2 = arith.cmpi ne, %1, %c0_i32_0 : i32
    scf.if %2 {
      %cst_16 = arith.constant 0.000000e+00 : f32
      %19 = vector.broadcast %cst_16 : f32 to vector<16x32xf32>
      %c0_17 = arith.constant 0 : index
      %c0_18 = arith.constant 0 : index
      %20 = vector.load %arg10[%c0_17, %c0_18] : memref<16x32xf32, #tpu.memory_space<vmem>>, vector<16x32xf32>
      tpu.vector_store %arg10[%c0_17, %c0_18], %19 {strides = array<i32>} : memref<16x32xf32, #tpu.memory_space<vmem>>, vector<16x32xf32>,
    } else {
    }
    %c0 = arith.constant 0 : index
    %c0_1 = arith.constant 0 : index
    %3 = vector.load %arg2[%c0, %c0_1] : memref<16x32xf32, #tpu.memory_space<vmem>>, vector<16x32xf32>
    %c0_2 = arith.constant 0 : index
    %c0_3 = arith.constant 0 : index
    %4 = vector.load %arg3[%c0_2, %c0_3] : memref<32x64xf32, #tpu.memory_space<vmem>>, vector<32x64xf32>
    %cst = arith.constant dense<0.000000e+00> : vector<16x64xf32>
    %5 = tpu.matmul %3, %4, %cst {dimension_numbers = #tpu.dot_dimension_numbers<[1], [0], [0], [1], [0, 0, 1, 1], [], []>} : vector<16x32xf32>, vector<32x64xf32>, vector<16x64xf32> -> vector<16x64xf32>
    %c0_4 = arith.constant 0 : index
    %c0_5 = arith.constant 0 : index
    %6 = vector.load %arg4[%c0_4, %c0_5] : memref<1x64xf32, #tpu.memory_space<vmem>>, vector<1x64xf32>
    %7 = vector.broadcast %6 : vector<1x64xf32> to vector<16x64xf32>
    %8 = arith.addf %5, %7 : vector<16x64xf32>
    %cst_6 = arith.constant 0.000000e+00 : f32
    %9 = vector.broadcast %cst_6 : f32 to vector<16x64xf32>
    %10 = arith.maximumf %8, %9 : vector<16x64xf32>
    %c0_7 = arith.constant 0 : index
    %c0_8 = arith.constant 0 : index
    %11 = vector.load %arg10[%c0_7, %c0_8] : memref<16x32xf32, #tpu.memory_space<vmem>>, vector<16x32xf32>
    %c0_9 = arith.constant 0 : index
    %c0_10 = arith.constant 0 : index
    %12 = vector.load %arg5[%c0_9, %c0_10] : memref<64x32xf32, #tpu.memory_space<vmem>>, vector<64x32xf32>
    %cst_11 = arith.constant dense<0.000000e+00> : vector<16x32xf32>
    %13 = tpu.matmul %10, %12, %cst_11 {dimension_numbers = #tpu.dot_dimension_numbers<[1], [0], [0], [1], [0, 0, 1, 1], [], []>} : vector<16x64xf32>, vector<64x32xf32>, vector<16x32xf32> -> vector<16x32xf32>
    %14 = arith.addf %11, %13 : vector<16x32xf32>
    %c0_12 = arith.constant 0 : index
    %c0_13 = arith.constant 0 : index
    %15 = vector.load %arg10[%c0_12, %c0_13] : memref<16x32xf32, #tpu.memory_space<vmem>>, vector<16x32xf32>
    tpu.vector_store %arg10[%c0_12, %c0_13], %14 {strides = array<i32>} : memref<16x32xf32, #tpu.memory_space<vmem>>, vector<16x32xf32>,
    %c0_i32_14 = arith.constant 0 : i32
    %16 = arith.cmpi eq, %arg1, %c0_i32_14 : i32
    %17 = arith.extui %16 : i1 to i32
    %c0_i32_15 = arith.constant 0 : i32
    %18 = arith.cmpi ne, %17, %c0_i32_15 : i32
    scf.if %18 {
      %c0_16 = arith.constant 0 : index
      %c0_17 = arith.constant 0 : index
      %19 = vector.load %arg10[%c0_16, %c0_17] : memref<16x32xf32, #tpu.memory_space<vmem>>, vector<16x32xf32>
      %c0_18 = arith.constant 0 : index
      %c0_19 = arith.constant 0 : index
      %20 = vector.load %arg6[%c0_18, %c0_19] : memref<1x32xf32, #tpu.memory_space<vmem>>, vector<1x32xf32>
      %21 = vector.broadcast %20 : vector<1x32xf32> to vector<16x32xf32>
      %22 = arith.addf %19, %21 : vector<16x32xf32>
      %23 = arith.addf %3, %22 : vector<16x32xf32>
      %cst_20 = arith.constant dense<0.000000e+00> : vector<16xf32>
      %24 = vector.multi_reduction <add>, %23, %cst_20 [1] : vector<16x32xf32> to vector<16xf32>
      %25 = vector.shape_cast %24 : vector<16xf32> to vector<16x1xf32>
      %cst_21 = arith.constant 3.200000e+01 : f32
      %26 = vector.broadcast %cst_21 : f32 to vector<16x1xf32>
      %27 = arith.divf %25, %26 : vector<16x1xf32>
      %28 = vector.broadcast %27 : vector<16x1xf32> to vector<16x32xf32>
      %29 = arith.subf %23, %28 : vector<16x32xf32>
      %30 = arith.mulf %29, %29 : vector<16x32xf32>
      %cst_22 = arith.constant dense<0.000000e+00> : vector<16xf32>
      %31 = vector.multi_reduction <add>, %30, %cst_22 [1] : vector<16x32xf32> to vector<16xf32>
      %32 = vector.shape_cast %31 : vector<16xf32> to vector<16x1xf32>
      %cst_23 = arith.constant 3.200000e+01 : f32
      %33 = vector.broadcast %cst_23 : f32 to vector<16x1xf32>
      %34 = arith.divf %32, %33 : vector<16x1xf32>
      %cst_24 = arith.constant 9.99999997E-7 : f32
      %35 = vector.broadcast %cst_24 : f32 to vector<16x1xf32>
      %36 = arith.addf %34, %35 : vector<16x1xf32>
      %37 = math.rsqrt %36 : vector<16x1xf32>
      %38 = vector.broadcast %37 : vector<16x1xf32> to vector<16x32xf32>
      %39 = arith.mulf %29, %38 : vector<16x32xf32>
      %c0_25 = arith.constant 0 : index
      %c0_26 = arith.constant 0 : index
      %40 = vector.load %arg7[%c0_25, %c0_26] : memref<1x32xf32, #tpu.memory_space<vmem>>, vector<1x32xf32>
      %41 = vector.broadcast %40 : vector<1x32xf32> to vector<16x32xf32>
      %42 = arith.mulf %39, %41 : vector<16x32xf32>
      %c0_27 = arith.constant 0 : index
      %c0_28 = arith.constant 0 : index
      %43 = vector.load %arg8[%c0_27, %c0_28] : memref<1x32xf32, #tpu.memory_space<vmem>>, vector<1x32xf32>
      %44 = vector.broadcast %43 : vector<1x32xf32> to vector<16x32xf32>
      %45 = arith.addf %42, %44 : vector<16x32xf32>
      %c0_29 = arith.constant 0 : index
      %c0_30 = arith.constant 0 : index
      %46 = vector.load %arg9[%c0_29, %c0_30] : memref<16x32xf32, #tpu.memory_space<vmem>>, vector<16x32xf32>
      tpu.vector_store %arg9[%c0_29, %c0_30], %45 {strides = array<i32>} : memref<16x32xf32, #tpu.memory_space<vmem>>, vector<16x32xf32>,
    } else {
    }
    return
  }
  func.func @transform_0(%arg0: i32, %arg1: i32) -> (i32, i32) {
    %c0_i32 = arith.constant 0 : i32
    %c0_i32_0 = arith.constant 0 : i32
    return %arg0, %c0_i32 : i32, i32
  }
  func.func @transform_1(%arg0: i32, %arg1: i32) -> (i32, i32) {
    %c0_i32 = arith.constant 0 : i32
    %c0_i32_0 = arith.constant 0 : i32
    return %c0_i32, %arg1 : i32, i32
  }
  func.func @transform_2(%arg0: i32, %arg1: i32) -> (i32, i32) {
    %c0_i32 = arith.constant 0 : i32
    %c0_i32_0 = arith.constant 0 : i32
    return %c0_i32, %arg1 : i32, i32
  }
  func.func @transform_3(%arg0: i32, %arg1: i32) -> (i32, i32) {
    %c0_i32 = arith.constant 0 : i32
    %c0_i32_0 = arith.constant 0 : i32
    return %arg1, %c0_i32 : i32, i32
  }
  func.func @transform_4(%arg0: i32, %arg1: i32) -> (i32, i32) {
    %c0_i32 = arith.constant 0 : i32
    %c0_i32_0 = arith.constant 0 : i32
    %c0_i32_1 = arith.constant 0 : i32
    return %c0_i32, %c0_i32_0 : i32, i32
  }
  func.func @transform_5(%arg0: i32, %arg1: i32) -> (i32, i32) {
    %c0_i32 = arith.constant 0 : i32
    %c0_i32_0 = arith.constant 0 : i32
    %c0_i32_1 = arith.constant 0 : i32
    return %c0_i32, %c0_i32_0 : i32, i32
  }
  func.func @transform_6(%arg0: i32, %arg1: i32) -> (i32, i32) {
    %c0_i32 = arith.constant 0 : i32
    %c0_i32_0 = arith.constant 0 : i32
    %c0_i32_1 = arith.constant 0 : i32
    return %c0_i32, %c0_i32_0 : i32, i32
  }
  func.func @transform_7(%arg0: i32, %arg1: i32) -> (i32, i32) {
    %c0_i32 = arith.constant 0 : i32
    %c0_i32_0 = arith.constant 0 : i32
    return %arg0, %c0_i32 : i32, i32
  }
}

</mosaic_0001>

<llo_original>
// kernel: transformer_encoder_layer.4
$region0: #{transformer_encoder_layer.4}
  #allocation0 [shape = 'u32[]', space=smem, size = 0x4, offset = 0x4, fixed_abs, tag = 'smem constant byte address 0x4 - core index']
  #allocation1 [shape = 'u32[144,128]{1,0:T(1,128)}', space=vmem, size = 0x12000, scoped, tag = 'internal scratch']
  %s0 = inlined_call_operand.vmem [shape: f32[16,32], index: 0, kind: input, shape index: {}]
  %s1 = inlined_call_operand.vmem [shape: f32[32,96], index: 1, kind: input, shape index: {}]
  %s2 = inlined_call_operand.vmem [shape: f32[1,96], index: 2, kind: input, shape index: {}]
  %s3 = inlined_call_operand.vmem [shape: f32[16,96], index: 3, kind: output, shape index: {}]
  %s4 = sld [smem:[#allocation0]]
  $region22: #{transformer_encoder_layer.4} parent=0
    _
  %s6 = ssub.s32 1, %s4
  %s7 = scalar_select 0, %s6, %s4
  // Predicated region
  $region2: #{transformer_encoder_layer.4} parent=0 // pred_check
    _
  $region3: #{transformer_encoder_layer.4} parent=0 // pred_check_branch
    %9 = sbr.rel (0) target = $region5
  $region4: #{transformer_encoder_layer.4} parent=0 // pred_region
    _
  $region5: #{transformer_encoder_layer.4} parent=0 // pred_fallthru
    _
  // Predicated region
  $region6: #{transformer_encoder_layer.4} parent=0 // pred_check
    _
  $region7: #{transformer_encoder_layer.4} parent=0 // pred_check_branch
    %11 = sbr.rel (0) target = $region9
  $region8: #{transformer_encoder_layer.4} parent=0 // pred_region
    _
  $region9: #{transformer_encoder_layer.4} parent=0 // pred_fallthru
    _
  // Predicated region
  $region10: #{transformer_encoder_layer.4} parent=0 // pred_check
    _
  $region11: #{transformer_encoder_layer.4} parent=0 // pred_check_branch
    %13 = sbr.rel (0) target = $region13
  $region12: #{transformer_encoder_layer.4} parent=0 // pred_region
    _
  $region13: #{transformer_encoder_layer.4} parent=0 // pred_fallthru
    _
  %v14 = vld [vmem:[%s0] sm:$0xff]
  %v15 = vld [vmem:[%s0 + $0x8] sm:$0xff]
  %v16 = vld [vmem:[%s1] sm:$0xff]
  %v17 = vld [vmem:[%s1 + $0x8] sm:$0xff]
  %v18 = vld [vmem:[%s1 + $0x10] sm:$0xff]
  %v19 = vld [vmem:[%s1 + $0x18] sm:$0xff]
  %v20 = vld [vmem:[%s2] sm:$0x1]
  %v22 = vlaneseq
  %v23 = vshrl.u32 %v22, 7
  %v24 = vsub.s32 0, %v23
  %v25 = vrot.slane %v20, %v24
  %vm27 = vcmask 261120
  %v29 = vsel %vm27, %v14, 0
  %v32 = vsel %vm27, %v15, 0
  %34 = vmatprep.subr.mxu0 0.0
  %35 = vmatpush1.msra.mxu0 %v16
  %36 = vmatprep.subr.mxu0 0.0
  %37 = vmatpush1.msra.mxu0 %v17
  %38 = vmatprep.subr.mxu0 0.0
  %39 = vmatpush1.msra.mxu0 %v18
  %40 = vmatprep.subr.mxu0 0.0
  %41 = vmatpush1.msra.mxu0 %v19
  %42 = vmatprep.subr.mxu0 0.0
  %43 = vmatpush1.msra.mxu0 0.0
  %44 = vmatprep.subr.mxu0 0.0
  %45 = vmatpush1.msra.mxu0 0.0
  %46 = vmatprep.subr.mxu0 0.0
  %47 = vmatpush1.msra.mxu0 0.0
  %48 = vmatprep.subr.mxu0 0.0
  %49 = vmatpush1.msra.mxu0 0.0
  %50 = vmatprep.subr.mxu0 0.0
  %51 = vmatpush1.msra.mxu0 0.0
  %52 = vmatprep.subr.mxu0 0.0
  %53 = vmatpush1.msra.mxu0 0.0
  %54 = vmatprep.subr.mxu0 0.0
  %55 = vmatpush1.msra.mxu0 0.0
  %56 = vmatprep.subr.mxu0 0.0
  %57 = vmatpush1.msra.mxu0 0.0
  %58 = vmatprep.subr.mxu0 0.0
  %59 = vmatpush1.msra.mxu0 0.0
  %60 = vmatprep.subr.mxu0 0.0
  %61 = vmatpush1.msra.mxu0 0.0
  %62 = vmatprep.subr.mxu0 0.0
  %63 = vmatpush1.msra.mxu0 0.0
  %64 = vmatprep.subr.mxu0 0.0
  %65 = vmatpush1.msra.mxu0 0.0
  %66 = vmatprep.subr.mxu0 0.0
  %67 = vmatpush1.msra.mxu0 0.0
  %68 = vmatprep.subr.mxu0 0.0
  %69 = vmatpush1.msra.mxu0 0.0
  %70 = vmatprep.subr.mxu0 0.0
  %71 = vmatpush1.msra.mxu0 0.0
  %72 = vmatprep.subr.mxu0 0.0
  %73 = vmatpush1.msra.mxu0 0.0
  %74 = vmatprep.subr.mxu0 0.0
  %75 = vmatpush1.msra.mxu0 0.0
  %76 = vmatprep.subr.mxu0 0.0
  %77 = vmatpush1.msra.mxu0 0.0
  %78 = vmatprep.subr.mxu0 0.0
  %79 = vmatpush1.msra.mxu0 0.0
  %80 = vmatprep.subr.mxu0 0.0
  %81 = vmatpush1.msra.mxu0 0.0
  %82 = vmatprep.subr.mxu0 0.0
  %83 = vmatpush1.msra.mxu0 0.0
  %84 = vmatprep.subr.mxu0 0.0
  %85 = vmatpush1.msra.mxu0 0.0
  %86 = vmatprep.subr.mxu0 0.0
  %87 = vmatpush1.msra.mxu0 0.0
  %88 = vmatprep.subr.mxu0 0.0
  %89 = vmatpush1.msra.mxu0 0.0
  %90 = vmatprep.subr.mxu0 0.0
  %91 = vmatpush1.msra.mxu0 0.0
  %92 = vmatprep.subr.mxu0 0.0
  %93 = vmatpush1.msra.mxu0 0.0
  %94 = vmatprep.subr.mxu0 0.0
  %95 = vmatpush1.msra.mxu0 0.0
  %96 = vmatprep.subr.mxu0 0.0
  %97 = vmatpush1.msra.mxu0 0.0
  %98 = vmatprep.mubr.f32.mxu0 0.0
  %99 = vmatmul.mubr.f32.gmra.mrb[0].mxu0 %v29
  %v100 = vpop.f32.mrb[0].mxu0
  %v101 = vadd.f32 %v25, %v100
  %v102 = vpop.f32.mrb[0].mxu0
  %103 = vmatprep.mubr.f32.mxu0 0.0
  %104 = vmatmul.mubr.f32.gmra.mrb[0].mxu0 %v32
  %v105 = vpop.f32.mrb[0].mxu0
  %v106 = vadd.f32 %v25, %v105
  %v107 = vpop.f32.mrb[0].mxu0
  %108 = vdwg.mxu0
  %vm109 = vcmask 785408
  %110 = vst.msk [vmem:[%s3] sm:$0xff] %vm109, %v101
  %111 = vst.msk [vmem:[%s3 + $0x8] sm:$0xff] %vm109, %v106
  // Predicated region
  $region14: #{transformer_encoder_layer.4} parent=0 // pred_check
    _
  $region15: #{transformer_encoder_layer.4} parent=0 // pred_check_branch
    %113 = sbr.rel (0) target = $region17
  $region16: #{transformer_encoder_layer.4} parent=0 // pred_region
    _
  $region17: #{transformer_encoder_layer.4} parent=0 // pred_fallthru
    _
  // Predicated region
  $region18: #{transformer_encoder_layer.4} parent=0 // pred_check
    _
  $region19: #{transformer_encoder_layer.4} parent=0 // pred_check_branch
    %115 = sbr.rel (0) target = $region21
  $region20: #{transformer_encoder_layer.4} parent=0 // pred_region
    _
  $region21: #{transformer_encoder_layer.4} parent=0 // pred_fallthru
    _

// kernel: transformer_encoder_layer.6
$region0: #{transformer_encoder_layer.6}
  #allocation0 [shape = 'u32[]', space=smem, size = 0x4, offset = 0x4, fixed_abs, tag = 'smem constant byte address 0x4 - core index']
  #allocation1 [shape = 'u32[144,128]{1,0:T(1,128)}', space=vmem, size = 0x12000, scoped, tag = 'internal scratch']
  %s0 = inlined_call_operand.vmem [shape: f32[16,32], index: 0, kind: input, shape index: {}]
  %s1 = inlined_call_operand.vmem [shape: f32[16,32], index: 1, kind: input, shape index: {}]
  %s2 = inlined_call_operand.vmem [shape: f32[1,32], index: 2, kind: input, shape index: {}]
  %s3 = inlined_call_operand.vmem [shape: f32[1,32], index: 3, kind: input, shape index: {}]
  %s4 = inlined_call_operand.vmem [shape: f32[16,32], index: 4, kind: output, shape index: {}]
  %s5 = sld [smem:[#allocation0]]
  $region26: #{transformer_encoder_layer.6} parent=0
    _
  %s7 = ssub.s32 1, %s5
  %s8 = scalar_select 0, %s7, %s5
  // Predicated region
  $region2: #{transformer_encoder_layer.6} parent=0 // pred_check
    _
  $region3: #{transformer_encoder_layer.6} parent=0 // pred_check_branch
    %10 = sbr.rel (0) target = $region5
  $region4: #{transformer_encoder_layer.6} parent=0 // pred_region
    _
  $region5: #{transformer_encoder_layer.6} parent=0 // pred_fallthru
    _
  // Predicated region
  $region6: #{transformer_encoder_layer.6} parent=0 // pred_check
    _
  $region7: #{transformer_encoder_layer.6} parent=0 // pred_check_branch
    %12 = sbr.rel (0) target = $region9
  $region8: #{transformer_encoder_layer.6} parent=0 // pred_region
    _
  $region9: #{transformer_encoder_layer.6} parent=0 // pred_fallthru
    _
  // Predicated region
  $region10: #{transformer_encoder_layer.6} parent=0 // pred_check
    _
  $region11: #{transformer_encoder_layer.6} parent=0 // pred_check_branch
    %14 = sbr.rel (0) target = $region13
  $region12: #{transformer_encoder_layer.6} parent=0 // pred_region
    _
  $region13: #{transformer_encoder_layer.6} parent=0 // pred_fallthru
    _
  // Predicated region
  $region14: #{transformer_encoder_layer.6} parent=0 // pred_check
    _
  $region15: #{transformer_encoder_layer.6} parent=0 // pred_check_branch
    %16 = sbr.rel (0) target = $region17
  $region16: #{transformer_encoder_layer.6} parent=0 // pred_region
    _
  $region17: #{transformer_encoder_layer.6} parent=0 // pred_fallthru
    _
  %v17 = vld [vmem:[%s0] sm:$0xff]
  %v18 = vld [vmem:[%s0 + $0x8] sm:$0xff]
  %v19 = vld [vmem:[%s1] sm:$0xff]
  %v20 = vld [vmem:[%s1 + $0x8] sm:$0xff]
  %v21 = vadd.f32 %v17, %v19
  %v22 = vadd.f32 %v18, %v20
  %vm23 = vcmask 261120
  %v24 = vsel %vm23, %v21, 0.0
  %25 = vadd.xlane.f32.xlu0 %v24
  %v26 = vpop.xlane.xlu0 %25
  %v27 = vsel %vm23, %v22, 0.0
  %28 = vadd.xlane.f32.xlu0 %v27
  %v29 = vpop.xlane.xlu0 %28
  %v30 = vrcp.pop 32.0
  %v31 = vmul.f32 %v26, %v30
  %v32 = vmul.f32 %v29, %v30
  %v33 = vsub.f32 %v21, %v31
  %v34 = vsub.f32 %v22, %v32
  %v35 = vmul.f32 %v33, %v33
  %v36 = vmul.f32 %v34, %v34
  %v37 = vsel %vm23, %v35, 0.0
  %38 = vadd.xlane.f32.xlu0 %v37
  %v39 = vpop.xlane.xlu0 %38
  %v40 = vsel %vm23, %v36, 0.0
  %41 = vadd.xlane.f32.xlu0 %v40
  %v42 = vpop.xlane.xlu0 %41
  %v43 = vmul.f32 %v39, %v30
  %v44 = vmul.f32 %v42, %v30
  %v45 = vadd.f32 %v43, 1e-06
  %v46 = vadd.f32 %v44, 1e-06
  %v47 = vrsqrt.pop %v45
  %v48 = vrsqrt.pop %v46
  %v49 = vmul.f32 %v33, %v47
  %v50 = vmul.f32 %v34, %v48
  %v51 = vld [vmem:[%s2] sm:$0x1]
  %v53 = vlaneseq
  %v54 = vshrl.u32 %v53, 7
  %v55 = vsub.s32 0, %v54
  %v56 = vrot.slane %v51, %v55
  %v58 = vmul.f32 %v49, %v56
  %v59 = vmul.f32 %v50, %v56
  %v60 = vld [vmem:[%s3] sm:$0x1]
  %v62 = vlaneseq
  %v63 = vshrl.u32 %v62, 7
  %v64 = vsub.s32 0, %v63
  %v65 = vrot.slane %v60, %v64
  %v67 = vadd.f32 %v58, %v65
  %v68 = vadd.f32 %v59, %v65
  %69 = vst.msk [vmem:[%s4] sm:$0xff] %vm23, %v67
  %70 = vst.msk [vmem:[%s4 + $0x8] sm:$0xff] %vm23, %v68
  // Predicated region
  $region18: #{transformer_encoder_layer.6} parent=0 // pred_check
    _
  $region19: #{transformer_encoder_layer.6} parent=0 // pred_check_branch
    %72 = sbr.rel (0) target = $region21
  $region20: #{transformer_encoder_layer.6} parent=0 // pred_region
    _
  $region21: #{transformer_encoder_layer.6} parent=0 // pred_fallthru
    _
  // Predicated region
  $region22: #{transformer_encoder_layer.6} parent=0 // pred_check
    _
  $region23: #{transformer_encoder_layer.6} parent=0 // pred_check_branch
    %74 = sbr.rel (0) target = $region25
  $region24: #{transformer_encoder_layer.6} parent=0 // pred_region
    _
  $region25: #{transformer_encoder_layer.6} parent=0 // pred_fallthru
    _

// kernel: transformer_encoder_layer.5
$region0: #{transformer_encoder_layer.5}
  #allocation0 [shape = 'u32[]', space=smem, size = 0x4, offset = 0x4, fixed_abs, tag = 'smem constant byte address 0x4 - core index']
  #allocation1 [shape = 'u32[144,128]{1,0:T(1,128)}', space=vmem, size = 0x12000, scoped, tag = 'internal scratch']
  %s0 = inlined_call_operand.vmem [shape: f32[2,4,8,8], index: 0, kind: input, shape index: {}]
  %s1 = inlined_call_operand.vmem [shape: f32[2,4,8,8], index: 1, kind: input, shape index: {}]
  %s2 = inlined_call_operand.vmem [shape: f32[2,4,8,8], index: 2, kind: input, shape index: {}]
  %s3 = inlined_call_operand.vmem [shape: f32[2,8,8], index: 3, kind: input, shape index: {}]
  %s4 = inlined_call_operand.vmem [shape: f32[2,4,8,8], index: 4, kind: output, shape index: {}]
  %s5 = sld [smem:[#allocation0]]
  $region49: #{transformer_encoder_layer.5} parent=0
    _
  %s7 = ssub.s32 1, %s5
  %s8 = scalar_select 0, %s7, %s5
  loop: start=0, step=1, limit=4
  $region2: #{transformer_encoder_layer.5} parent=0 // loop_pre_header
    _
  $region3: #{transformer_encoder_layer.5} parent=0 // loop_header
    %s10 = sphi 0, %s14
    %p11 = scmp.ge.s32.totalorder %s10, 4
    %s20 = sphi 0, %s22
    %s23 = sphi 0, %s20
    %s24 = sphi 0, %s23
    %s40 = sphi 0, %s24
    %s46 = sphi 0, %s48
    %s49 = sphi 0, %s46
    %s50 = sphi 0, %s49
    %s66 = sphi 0, %s50
    %s72 = sphi 0, %s74
    %s75 = sphi 0, %s72
    %s76 = sphi 0, %s75
    %s92 = sphi 0, %s76
    %s98 = sphi 0, %s100
    %s101 = sphi 0, %s98
    %s102 = sphi 0, %s101
    %s118 = sphi 0, %s102
    %s124 = sphi 0, %s126
    %s127 = sphi 0, %s124
    %s128 = sphi 0, %s127
    %s144 = sphi 0, %s128
  $region4: #{transformer_encoder_layer.5} parent=0 // loop_header_branch
    %13 = sbr.rel (%p11) target = $region8
  $region5: #{transformer_encoder_layer.5} parent=0 // loop_body
    %s15 = ssub.s32 %s10, 1
    %s16 = ssub.s32 %s10, 2
    %s17 = sadd.s32 %s10, 1
    %s18 = ssub.s32 %s10, %s17
    %p19 = scmp.eq.s32.totalorder %s18, 0
    %s21 = sadd.s32 %s20, 1
    %s22 = scalar_select %p19, %s20, %s21
    %p25 = pneg %p19
    %p26 = scmp.eq.s32.totalorder %s10, 1
    %p27 = por %p25, %p26
    %p28 = scmp.ne.s32.totalorder %s20, %s23
    %p29 = scmp.eq.s32.totalorder %s10, 0
    %p30 = por %p28, %p29
    %p31 = scmp.ne.s32.totalorder %s20, %s23
    %p32 = scmp.eq.s32.totalorder %s15, 1
    %p33 = por %p31, %p32
    %p34 = scmp.ne.s32.totalorder %s23, %s24
    %p35 = scmp.eq.s32.totalorder %s15, 0
    %p36 = por %p34, %p35
    %p37 = scmp.ne.s32.totalorder %s23, %s24
    %p38 = scmp.eq.s32.totalorder %s16, 1
    %p39 = por %p37, %p38
    %p41 = scmp.ne.s32.totalorder %s24, %s40
    %p42 = scmp.eq.s32.totalorder %s16, 0
    %p43 = por %p41, %p42
    %s44 = ssub.s32 %s10, %s17
    %p45 = scmp.eq.s32.totalorder %s44, 0
    %s47 = sadd.s32 %s46, 1
    %s48 = scalar_select %p45, %s46, %s47
    %p51 = pneg %p45
    %p52 = scmp.eq.s32.totalorder %s10, 1
    %p53 = por %p51, %p52
    %p54 = scmp.ne.s32.totalorder %s46, %s49
    %p55 = scmp.eq.s32.totalorder %s10, 0
    %p56 = por %p54, %p55
    %p57 = scmp.ne.s32.totalorder %s46, %s49
    %p58 = scmp.eq.s32.totalorder %s15, 1
    %p59 = por %p57, %p58
    %p60 = scmp.ne.s32.totalorder %s49, %s50
    %p61 = scmp.eq.s32.totalorder %s15, 0
    %p62 = por %p60, %p61
    %p63 = scmp.ne.s32.totalorder %s49, %s50
    %p64 = scmp.eq.s32.totalorder %s16, 1
    %p65 = por %p63, %p64
    %p67 = scmp.ne.s32.totalorder %s50, %s66
    %p68 = scmp.eq.s32.totalorder %s16, 0
    %p69 = por %p67, %p68
    %s70 = ssub.s32 %s10, %s17
    %p71 = scmp.eq.s32.totalorder %s70, 0
    %s73 = sadd.s32 %s72, 1
    %s74 = scalar_select %p71, %s72, %s73
    %p77 = pneg %p71
    %p78 = scmp.eq.s32.totalorder %s10, 1
    %p79 = por %p77, %p78
    %p80 = scmp.ne.s32.totalorder %s72, %s75
    %p81 = scmp.eq.s32.totalorder %s10, 0
    %p82 = por %p80, %p81
    %p83 = scmp.ne.s32.totalorder %s72, %s75
    %p84 = scmp.eq.s32.totalorder %s15, 1
    %p85 = por %p83, %p84
    %p86 = scmp.ne.s32.totalorder %s75, %s76
    %p87 = scmp.eq.s32.totalorder %s15, 0
    %p88 = por %p86, %p87
    %p89 = scmp.ne.s32.totalorder %s75, %s76
    %p90 = scmp.eq.s32.totalorder %s16, 1
    %p91 = por %p89, %p90
    %p93 = scmp.ne.s32.totalorder %s76, %s92
    %p94 = scmp.eq.s32.totalorder %s16, 0
    %p95 = por %p93, %p94
    %s96 = ssub.s32 %s10, %s17
    %p97 = scmp.eq.s32.totalorder %s96, 0
    %s99 = sadd.s32 %s98, 1
    %s100 = scalar_select %p97, %s98, %s99
    %p103 = pneg %p97
    %p104 = scmp.eq.s32.totalorder %s10, 1
    %p105 = por %p103, %p104
    %p106 = scmp.ne.s32.totalorder %s98, %s101
    %p107 = scmp.eq.s32.totalorder %s10, 0
    %p108 = por %p106, %p107
    %p109 = scmp.ne.s32.totalorder %s98, %s101
    %p110 = scmp.eq.s32.totalorder %s15, 1
    %p111 = por %p109, %p110
    %p112 = scmp.ne.s32.totalorder %s101, %s102
    %p113 = scmp.eq.s32.totalorder %s15, 0
    %p114 = por %p112, %p113
    %p115 = scmp.ne.s32.totalorder %s101, %s102
    %p116 = scmp.eq.s32.totalorder %s16, 1
    %p117 = por %p115, %p116
    %p119 = scmp.ne.s32.totalorder %s102, %s118
    %p120 = scmp.eq.s32.totalorder %s16, 0
    %p121 = por %p119, %p120
    %s122 = ssub.s32 %s10, %s17
    %p123 = scmp.eq.s32.totalorder %s122, 0
    %s125 = sadd.s32 %s124, 1
    %s126 = scalar_select %p123, %s124, %s125
    %p129 = pneg %p123
    %p130 = scmp.eq.s32.totalorder %s10, 1
    %p131 = por %p129, %p130
    %p132 = scmp.ne.s32.totalorder %s124, %s127
    %p133 = scmp.eq.s32.totalorder %s10, 0
    %p134 = por %p132, %p133
    %p135 = scmp.ne.s32.totalorder %s124, %s127
    %p136 = scmp.eq.s32.totalorder %s15, 1
    %p137 = por %p135, %p136
    %p138 = scmp.ne.s32.totalorder %s127, %s128
    %p139 = scmp.eq.s32.totalorder %s15, 0
    %p140 = por %p138, %p139
    %p141 = scmp.ne.s32.totalorder %s127, %s128
    %p142 = scmp.eq.s32.totalorder %s16, 1
    %p143 = por %p141, %p142
    %p145 = scmp.ne.s32.totalorder %s128, %s144
    %p146 = scmp.eq.s32.totalorder %s16, 0
    %p147 = por %p145, %p146
    %p148 = scmp.le.s32.totalorder 1, %s10
    %p149 = scmp.lt.s32.totalorder %s10, 3
    %p150 = pnand %p148, %p149
    %p151 = pneg %p150
    // Predicated region
    $region9: #{transformer_encoder_layer.5} parent=5 // pred_check
      _
    $region10: #{transformer_encoder_layer.5} parent=5 // pred_check_branch
      %153 = sbr.rel (%p150) target = $region12
    $region11: #{transformer_encoder_layer.5} parent=5 // pred_region
      %s154 = ssub.s32 %s10, 1
    $region12: #{transformer_encoder_layer.5} parent=5 // pred_fallthru
      _
    %p155 = scmp.lt.s32.totalorder %s10, 2
    // Predicated region
    $region13: #{transformer_encoder_layer.5} parent=5 // pred_check
      %p156 = pneg %p155
    $region14: #{transformer_encoder_layer.5} parent=5 // pred_check_branch
      %158 = sbr.rel (%p156) target = $region16
    $region15: #{transformer_encoder_layer.5} parent=5 // pred_region
      // Predicated region
      $region17: #{transformer_encoder_layer.5} parent=15 // pred_check
        %p159 = pneg %p30
      $region18: #{transformer_encoder_layer.5} parent=15 // pred_check_branch
        %161 = sbr.rel (%p159) target = $region20
      $region19: #{transformer_encoder_layer.5} parent=15 // pred_region
        %p162 = scmp.lt.s32.totalorder %s10, 1
        %s163 = scalar_select %p162, %s10, 1
        %s164 = smul.addr %s163, 4
        %s165 = smul.addr %s164, 8
        %s166 = scalar_lea.vmem %s0, %s165
      $region20: #{transformer_encoder_layer.5} parent=15 // pred_fallthru
        _
      // Predicated region
      $region21: #{transformer_encoder_layer.5} parent=15 // pred_check
        %p167 = pneg %p56
      $region22: #{transformer_encoder_layer.5} parent=15 // pred_check_branch
        %169 = sbr.rel (%p167) target = $region24
      $region23: #{transformer_encoder_layer.5} parent=15 // pred_region
        %p170 = scmp.lt.s32.totalorder %s10, 1
        %s171 = scalar_select %p170, %s10, 1
        %s172 = smul.addr %s171, 4
        %s173 = smul.addr %s172, 8
        %s174 = scalar_lea.vmem %s1, %s173
      $region24: #{transformer_encoder_layer.5} parent=15 // pred_fallthru
        _
      // Predicated region
      $region25: #{transformer_encoder_layer.5} parent=15 // pred_check
        %p175 = pneg %p82
      $region26: #{transformer_encoder_layer.5} parent=15 // pred_check_branch
        %177 = sbr.rel (%p175) target = $region28
      $region27: #{transformer_encoder_layer.5} parent=15 // pred_region
        %p178 = scmp.lt.s32.totalorder %s10, 1
        %s179 = scalar_select %p178, %s10, 1
        %s180 = smul.addr %s179, 4
        %s181 = smul.addr %s180, 8
        %s182 = scalar_lea.vmem %s2, %s181
      $region28: #{transformer_encoder_layer.5} parent=15 // pred_fallthru
        _
      // Predicated region
      $region29: #{transformer_encoder_layer.5} parent=15 // pred_check
        %p183 = pneg %p108
      $region30: #{transformer_encoder_layer.5} parent=15 // pred_check_branch
        %185 = sbr.rel (%p183) target = $region32
      $region31: #{transformer_encoder_layer.5} parent=15 // pred_region
        %p186 = scmp.lt.s32.totalorder %s10, 1
        %s187 = scalar_select %p186, %s10, 1
        %s188 = smul.addr %s187, 8
        %s189 = scalar_lea.vmem %s3, %s188
      $region32: #{transformer_encoder_layer.5} parent=15 // pred_fallthru
        _
    $region16: #{transformer_encoder_layer.5} parent=5 // pred_fallthru
      _
    %p190 = scmp.le.s32.totalorder 1, %s10
    %p191 = scmp.lt.s32.totalorder %s10, 3
    %p192 = pnand %p190, %p191
    %p193 = pneg %p192
    // Predicated region
    $region33: #{transformer_encoder_layer.5} parent=5 // pred_check
      _
    $region34: #{transformer_encoder_layer.5} parent=5 // pred_check_branch
      %195 = sbr.rel (%p192) target = $region36
    $region35: #{transformer_encoder_layer.5} parent=5 // pred_region
      %s196 = ssub.s32 %s10, 1
      %p197 = scmp.lt.s32.totalorder %s15, 1
      %s198 = scalar_select %p197, %s15, 1
      %s199 = smul.addr %s198, 4
      %s200 = smul.addr %s199, 8
      %s201 = scalar_lea.vmem %s0, %s200
      %p202 = pneg %p36
      %p203 = pneg %p33
      %p204 = scmp.lt.s32.totalorder %s15, 1
      %s205 = scalar_select %p204, %s15, 1
      %s206 = smul.addr %s205, 4
      %s207 = smul.addr %s206, 8
      %s208 = scalar_lea.vmem %s1, %s207
      %p209 = pneg %p62
      %p210 = pneg %p59
      %p211 = scmp.lt.s32.totalorder %s15, 1
      %s212 = scalar_select %p211, %s15, 1
      %s213 = smul.addr %s212, 4
      %s214 = smul.addr %s213, 8
      %s215 = scalar_lea.vmem %s2, %s214
      %p216 = pneg %p88
      %p217 = pneg %p85
      %p218 = scmp.lt.s32.totalorder %s15, 1
      %s219 = scalar_select %p218, %s15, 1
      %s220 = smul.addr %s219, 8
      %s221 = scalar_lea.vmem %s3, %s220
      %p222 = pneg %p114
      %p223 = pneg %p111
      %p224 = pneg %p140
      %p225 = pneg %p137
      %p226 = scmp.lt.s32.totalorder %s15, 1
      %s227 = scalar_select %p226, %s15, 1
      %s228 = smul.addr %s227, 4
      %s229 = smul.addr %s228, 8
      %s230 = scalar_lea.vmem %s4, %s229
      %p231 = scmp.lt.s32.totalorder %s15, 1
      %s232 = scalar_select %p231, %s15, 1
      %s233 = smul.addr %s232, 4
      %s234 = smul.addr %s233, 8
      %s235 = scalar_lea.vmem %s0, %s234
      %p236 = scmp.lt.s32.totalorder %s15, 1
      %s237 = scalar_select %p236, %s15, 1
      %s238 = smul.addr %s237, 4
      %s239 = smul.addr %s238, 8
      %s240 = scalar_lea.vmem %s1, %s239
      %p241 = scmp.lt.s32.totalorder %s15, 1
      %s242 = scalar_select %p241, %s15, 1
      %s243 = smul.addr %s242, 4
      %s244 = smul.addr %s243, 8
      %s245 = scalar_lea.vmem %s2, %s244
      %p246 = scmp.lt.s32.totalorder %s15, 1
      %s247 = scalar_select %p246, %s15, 1
      %s248 = smul.addr %s247, 8
      %s249 = scalar_lea.vmem %s3, %s248
      %p250 = scmp.lt.s32.totalorder %s15, 1
      %s251 = scalar_select %p250, %s15, 1
      %s252 = smul.addr %s251, 4
      %s253 = smul.addr %s252, 8
      %s254 = scalar_lea.vmem %s4, %s253
      %v255 = vld [vmem:[%s249] sm:$0xff]
      %v256 = vld [vmem:[%s235] sm:$0xff]
      %v257 = vld [vmem:[%s240] sm:$0xff]
      %vm258 = vcmask 64512
      %v260 = vsel %vm258, %v256, 0
      %v263 = vsel %vm258, %v257, 0
      %265 = vmatprep.subr.mxu0 0.0
      %266 = vmatpush1.xpose.msra.mxu0 %v263
      %267 = vmatprep.subr.mxu0 0.0
      %268 = vmatpush1.xpose.msra.mxu0 0.0
      %269 = vmatprep.subr.mxu0 0.0
      %270 = vmatpush1.xpose.msra.mxu0 0.0
      %271 = vmatprep.subr.mxu0 0.0
      %272 = vmatpush1.xpose.msra.mxu0 0.0
      %273 = vmatprep.subr.mxu0 0.0
      %274 = vmatpush1.xpose.msra.mxu0 0.0
      %275 = vmatprep.subr.mxu0 0.0
      %276 = vmatpush1.xpose.msra.mxu0 0.0
      %277 = vmatprep.subr.mxu0 0.0
      %278 = vmatpush1.xpose.msra.mxu0 0.0
      %279 = vmatprep.subr.mxu0 0.0
      %280 = vmatpush1.xpose.msra.mxu0 0.0
      %281 = vmatprep.subr.mxu0 0.0
      %282 = vmatpush1.xpose.msra.mxu0 0.0
      %283 = vmatprep.subr.mxu0 0.0
      %284 = vmatpush1.xpose.msra.mxu0 0.0
      %285 = vmatprep.subr.mxu0 0.0
      %286 = vmatpush1.xpose.msra.mxu0 0.0
      %287 = vmatprep.subr.mxu0 0.0
      %288 = vmatpush1.xpose.msra.mxu0 0.0
      %289 = vmatprep.subr.mxu0 0.0
      %290 = vmatpush1.xpose.msra.mxu0 0.0
      %291 = vmatprep.subr.mxu0 0.0
      %292 = vmatpush1.xpose.msra.mxu0 0.0
      %293 = vmatprep.subr.mxu0 0.0
      %294 = vmatpush1.xpose.msra.mxu0 0.0
      %295 = vmatprep.subr.mxu0 0.0
      %296 = vmatpush1.xpose.msra.mxu0 0.0
      %297 = vmatprep.subr.mxu0 0.0
      %298 = vmatpush1.xpose.msra.mxu0 0.0
      %299 = vmatprep.subr.mxu0 0.0
      %300 = vmatpush1.xpose.msra.mxu0 0.0
      %301 = vmatprep.subr.mxu0 0.0
      %302 = vmatpush1.xpose.msra.mxu0 0.0
      %303 = vmatprep.subr.mxu0 0.0
      %304 = vmatpush1.xpose.msra.mxu0 0.0
      %305 = vmatprep.subr.mxu0 0.0
      %306 = vmatpush1.xpose.msra.mxu0 0.0
      %307 = vmatprep.subr.mxu0 0.0
      %308 = vmatpush1.xpose.msra.mxu0 0.0
      %309 = vmatprep.subr.mxu0 0.0
      %310 = vmatpush1.xpose.msra.mxu0 0.0
      %311 = vmatprep.subr.mxu0 0.0
      %312 = vmatpush1.xpose.msra.mxu0 0.0
      %313 = vmatprep.subr.mxu0 0.0
      %314 = vmatpush1.xpose.msra.mxu0 0.0
      %315 = vmatprep.subr.mxu0 0.0
      %316 = vmatpush1.xpose.msra.mxu0 0.0
      %317 = vmatprep.subr.mxu0 0.0
      %318 = vmatpush1.xpose.msra.mxu0 0.0
      %319 = vmatprep.subr.mxu0 0.0
      %320 = vmatpush1.xpose.msra.mxu0 0.0
      %321 = vmatprep.subr.mxu0 0.0
      %322 = vmatpush1.xpose.msra.mxu0 0.0
      %323 = vmatprep.subr.mxu0 0.0
      %324 = vmatpush1.xpose.msra.mxu0 0.0
      %325 = vmatprep.subr.mxu0 0.0
      %326 = vmatpush1.xpose.msra.mxu0 0.0
      %327 = vmatprep.subr.mxu0 0.0
      %328 = vmatpush1.xpose.msra.mxu0 0.0
      %329 = vmatprep.mubr.f32.mxu0 0.0
      %330 = vmatmul.mubr.f32.gmra.mrb[0].mxu0 %v260
      %v331 = vpop.f32.mrb[0].mxu0
      %v332 = vadd.f32 0.0, %v331
      %v333 = vpop.f32.mrb[0].mxu0
      %334 = vdwg.mxu0
      %v335 = vmul.f32 %v332, 0.35355338
      %v336 = vadd.f32 %v335, %v255
      %v337 = vsel %vm258, %v336, -inf
      %338 = vmax.xlane.f32.xlu0 %v337
      %v339 = vpop.xlane.xlu0 %338
      %v340 = vsub.f32 %v336, %v339
      %v341 = vmul.f32 %v340, 1.442695
      %v342 = vpow.pop %v341
      %v343 = vsel %vm258, %v342, 0.0
      %344 = vadd.xlane.f32.xlu0 %v343
      %v345 = vpop.xlane.xlu0 %344
      %v346 = vrcp.pop %v345
      %v347 = vmul.f32 %v342, %v346
      %v348 = vld [vmem:[%s245] sm:$0xff]
      %v350 = vsel %vm258, %v347, 0
      %352 = vmatprep.subr.mxu0 0.0
      %353 = vmatpush1.msra.mxu0 %v348
      %354 = vmatprep.subr.mxu0 0.0
      %355 = vmatpush1.msra.mxu0 0.0
      %356 = vmatprep.subr.mxu0 0.0
      %357 = vmatpush1.msra.mxu0 0.0
      %358 = vmatprep.subr.mxu0 0.0
      %359 = vmatpush1.msra.mxu0 0.0
      %360 = vmatprep.subr.mxu0 0.0
      %361 = vmatpush1.msra.mxu0 0.0
      %362 = vmatprep.subr.mxu0 0.0
      %363 = vmatpush1.msra.mxu0 0.0
      %364 = vmatprep.subr.mxu0 0.0
      %365 = vmatpush1.msra.mxu0 0.0
      %366 = vmatprep.subr.mxu0 0.0
      %367 = vmatpush1.msra.mxu0 0.0
      %368 = vmatprep.subr.mxu0 0.0
      %369 = vmatpush1.msra.mxu0 0.0
      %370 = vmatprep.subr.mxu0 0.0
      %371 = vmatpush1.msra.mxu0 0.0
      %372 = vmatprep.subr.mxu0 0.0
      %373 = vmatpush1.msra.mxu0 0.0
      %374 = vmatprep.subr.mxu0 0.0
      %375 = vmatpush1.msra.mxu0 0.0
      %376 = vmatprep.subr.mxu0 0.0
      %377 = vmatpush1.msra.mxu0 0.0
      %378 = vmatprep.subr.mxu0 0.0
      %379 = vmatpush1.msra.mxu0 0.0
      %380 = vmatprep.subr.mxu0 0.0
      %381 = vmatpush1.msra.mxu0 0.0
      %382 = vmatprep.subr.mxu0 0.0
      %383 = vmatpush1.msra.mxu0 0.0
      %384 = vmatprep.subr.mxu0 0.0
      %385 = vmatpush1.msra.mxu0 0.0
      %386 = vmatprep.subr.mxu0 0.0
      %387 = vmatpush1.msra.mxu0 0.0
      %388 = vmatprep.subr.mxu0 0.0
      %389 = vmatpush1.msra.mxu0 0.0
      %390 = vmatprep.subr.mxu0 0.0
      %391 = vmatpush1.msra.mxu0 0.0
      %392 = vmatprep.subr.mxu0 0.0
      %393 = vmatpush1.msra.mxu0 0.0
      %394 = vmatprep.subr.mxu0 0.0
      %395 = vmatpush1.msra.mxu0 0.0
      %396 = vmatprep.subr.mxu0 0.0
      %397 = vmatpush1.msra.mxu0 0.0
      %398 = vmatprep.subr.mxu0 0.0
      %399 = vmatpush1.msra.mxu0 0.0
      %400 = vmatprep.subr.mxu0 0.0
      %401 = vmatpush1.msra.mxu0 0.0
      %402 = vmatprep.subr.mxu0 0.0
      %403 = vmatpush1.msra.mxu0 0.0
      %404 = vmatprep.subr.mxu0 0.0
      %405 = vmatpush1.msra.mxu0 0.0
      %406 = vmatprep.subr.mxu0 0.0
      %407 = vmatpush1.msra.mxu0 0.0
      %408 = vmatprep.subr.mxu0 0.0
      %409 = vmatpush1.msra.mxu0 0.0
      %410 = vmatprep.subr.mxu0 0.0
      %411 = vmatpush1.msra.mxu0 0.0
      %412 = vmatprep.subr.mxu0 0.0
      %413 = vmatpush1.msra.mxu0 0.0
      %414 = vmatprep.subr.mxu0 0.0
      %415 = vmatpush1.msra.mxu0 0.0
      %416 = vmatprep.mubr.f32.mxu0 0.0
      %417 = vmatmul.mubr.f32.gmra.mrb[0].mxu0 %v350
      %v418 = vpop.f32.mrb[0].mxu0
      %v419 = vadd.f32 0.0, %v418
      %v420 = vpop.f32.mrb[0].mxu0
      %421 = vdwg.mxu0
      %422 = vst.msk [vmem:[%s254] sm:$0xff] %vm258, %v419
      %s423 = scalar_lea.vmem %s235, 8
      %v424 = vld [vmem:[%s423] sm:$0xff]
      %s425 = scalar_lea.vmem %s240, 8
      %v426 = vld [vmem:[%s425] sm:$0xff]
      %v428 = vsel %vm258, %v424, 0
      %v431 = vsel %vm258, %v426, 0
      %433 = vmatprep.subr.mxu0 0.0
      %434 = vmatpush1.xpose.msra.mxu0 %v431
      %435 = vmatprep.subr.mxu0 0.0
      %436 = vmatpush1.xpose.msra.mxu0 0.0
      %437 = vmatprep.subr.mxu0 0.0
      %438 = vmatpush1.xpose.msra.mxu0 0.0
      %439 = vmatprep.subr.mxu0 0.0
      %440 = vmatpush1.xpose.msra.mxu0 0.0
      %441 = vmatprep.subr.mxu0 0.0
      %442 = vmatpush1.xpose.msra.mxu0 0.0
      %443 = vmatprep.subr.mxu0 0.0
      %444 = vmatpush1.xpose.msra.mxu0 0.0
      %445 = vmatprep.subr.mxu0 0.0
      %446 = vmatpush1.xpose.msra.mxu0 0.0
      %447 = vmatprep.subr.mxu0 0.0
      %448 = vmatpush1.xpose.msra.mxu0 0.0
      %449 = vmatprep.subr.mxu0 0.0
      %450 = vmatpush1.xpose.msra.mxu0 0.0
      %451 = vmatprep.subr.mxu0 0.0
      %452 = vmatpush1.xpose.msra.mxu0 0.0
      %453 = vmatprep.subr.mxu0 0.0
      %454 = vmatpush1.xpose.msra.mxu0 0.0
      %455 = vmatprep.subr.mxu0 0.0
      %456 = vmatpush1.xpose.msra.mxu0 0.0
      %457 = vmatprep.subr.mxu0 0.0
      %458 = vmatpush1.xpose.msra.mxu0 0.0
      %459 = vmatprep.subr.mxu0 0.0
      %460 = vmatpush1.xpose.msra.mxu0 0.0
      %461 = vmatprep.subr.mxu0 0.0
      %462 = vmatpush1.xpose.msra.mxu0 0.0
      %463 = vmatprep.subr.mxu0 0.0
      %464 = vmatpush1.xpose.msra.mxu0 0.0
      %465 = vmatprep.subr.mxu0 0.0
      %466 = vmatpush1.xpose.msra.mxu0 0.0
      %467 = vmatprep.subr.mxu0 0.0
      %468 = vmatpush1.xpose.msra.mxu0 0.0
      %469 = vmatprep.subr.mxu0 0.0
      %470 = vmatpush1.xpose.msra.mxu0 0.0
      %471 = vmatprep.subr.mxu0 0.0
      %472 = vmatpush1.xpose.msra.mxu0 0.0
      %473 = vmatprep.subr.mxu0 0.0
      %474 = vmatpush1.xpose.msra.mxu0 0.0
      %475 = vmatprep.subr.mxu0 0.0
      %476 = vmatpush1.xpose.msra.mxu0 0.0
      %477 = vmatprep.subr.mxu0 0.0
      %478 = vmatpush1.xpose.msra.mxu0 0.0
      %479 = vmatprep.subr.mxu0 0.0
      %480 = vmatpush1.xpose.msra.mxu0 0.0
      %481 = vmatprep.subr.mxu0 0.0
      %482 = vmatpush1.xpose.msra.mxu0 0.0
      %483 = vmatprep.subr.mxu0 0.0
      %484 = vmatpush1.xpose.msra.mxu0 0.0
      %485 = vmatprep.subr.mxu0 0.0
      %486 = vmatpush1.xpose.msra.mxu0 0.0
      %487 = vmatprep.subr.mxu0 0.0
      %488 = vmatpush1.xpose.msra.mxu0 0.0
      %489 = vmatprep.subr.mxu0 0.0
      %490 = vmatpush1.xpose.msra.mxu0 0.0
      %491 = vmatprep.subr.mxu0 0.0
      %492 = vmatpush1.xpose.msra.mxu0 0.0
      %493 = vmatprep.subr.mxu0 0.0
      %494 = vmatpush1.xpose.msra.mxu0 0.0
      %495 = vmatprep.subr.mxu0 0.0
      %496 = vmatpush1.xpose.msra.mxu0 0.0
      %497 = vmatprep.mubr.f32.mxu0 0.0
      %498 = vmatmul.mubr.f32.gmra.mrb[0].mxu0 %v428
      %v499 = vpop.f32.mrb[0].mxu0
      %v500 = vadd.f32 0.0, %v499
      %v501 = vpop.f32.mrb[0].mxu0
      %502 = vdwg.mxu0
      %v503 = vmul.f32 %v500, 0.35355338
      %v504 = vadd.f32 %v503, %v255
      %v505 = vsel %vm258, %v504, -inf
      %506 = vmax.xlane.f32.xlu0 %v505
      %v507 = vpop.xlane.xlu0 %506
      %v508 = vsub.f32 %v504, %v507
      %v509 = vmul.f32 %v508, 1.442695
      %v510 = vpow.pop %v509
      %v511 = vsel %vm258, %v510, 0.0
      %512 = vadd.xlane.f32.xlu0 %v511
      %v513 = vpop.xlane.xlu0 %512
      %v514 = vrcp.pop %v513
      %v515 = vmul.f32 %v510, %v514
      %s516 = scalar_lea.vmem %s245, 8
      %v517 = vld [vmem:[%s516] sm:$0xff]
      %v519 = vsel %vm258, %v515, 0
      %521 = vmatprep.subr.mxu0 0.0
      %522 = vmatpush1.msra.mxu0 %v517
      %523 = vmatprep.subr.mxu0 0.0
      %524 = vmatpush1.msra.mxu0 0.0
      %525 = vmatprep.subr.mxu0 0.0
      %526 = vmatpush1.msra.mxu0 0.0
      %527 = vmatprep.subr.mxu0 0.0
      %528 = vmatpush1.msra.mxu0 0.0
      %529 = vmatprep.subr.mxu0 0.0
      %530 = vmatpush1.msra.mxu0 0.0
      %531 = vmatprep.subr.mxu0 0.0
      %532 = vmatpush1.msra.mxu0 0.0
      %533 = vmatprep.subr.mxu0 0.0
      %534 = vmatpush1.msra.mxu0 0.0
      %535 = vmatprep.subr.mxu0 0.0
      %536 = vmatpush1.msra.mxu0 0.0
      %537 = vmatprep.subr.mxu0 0.0
      %538 = vmatpush1.msra.mxu0 0.0
      %539 = vmatprep.subr.mxu0 0.0
      %540 = vmatpush1.msra.mxu0 0.0
      %541 = vmatprep.subr.mxu0 0.0
      %542 = vmatpush1.msra.mxu0 0.0
      %543 = vmatprep.subr.mxu0 0.0
      %544 = vmatpush1.msra.mxu0 0.0
      %545 = vmatprep.subr.mxu0 0.0
      %546 = vmatpush1.msra.mxu0 0.0
      %547 = vmatprep.subr.mxu0 0.0
      %548 = vmatpush1.msra.mxu0 0.0
      %549 = vmatprep.subr.mxu0 0.0
      %550 = vmatpush1.msra.mxu0 0.0
      %551 = vmatprep.subr.mxu0 0.0
      %552 = vmatpush1.msra.mxu0 0.0
      %553 = vmatprep.subr.mxu0 0.0
      %554 = vmatpush1.msra.mxu0 0.0
      %555 = vmatprep.subr.mxu0 0.0
      %556 = vmatpush1.msra.mxu0 0.0
      %557 = vmatprep.subr.mxu0 0.0
      %558 = vmatpush1.msra.mxu0 0.0
      %559 = vmatprep.subr.mxu0 0.0
      %560 = vmatpush1.msra.mxu0 0.0
      %561 = vmatprep.subr.mxu0 0.0
      %562 = vmatpush1.msra.mxu0 0.0
      %563 = vmatprep.subr.mxu0 0.0
      %564 = vmatpush1.msra.mxu0 0.0
      %565 = vmatprep.subr.mxu0 0.0
      %566 = vmatpush1.msra.mxu0 0.0
      %567 = vmatprep.subr.mxu0 0.0
      %568 = vmatpush1.msra.mxu0 0.0
      %569 = vmatprep.subr.mxu0 0.0
      %570 = vmatpush1.msra.mxu0 0.0
      %571 = vmatprep.subr.mxu0 0.0
      %572 = vmatpush1.msra.mxu0 0.0
      %573 = vmatprep.subr.mxu0 0.0
      %574 = vmatpush1.msra.mxu0 0.0
      %575 = vmatprep.subr.mxu0 0.0
      %576 = vmatpush1.msra.mxu0 0.0
      %577 = vmatprep.subr.mxu0 0.0
      %578 = vmatpush1.msra.mxu0 0.0
      %579 = vmatprep.subr.mxu0 0.0
      %580 = vmatpush1.msra.mxu0 0.0
      %581 = vmatprep.subr.mxu0 0.0
      %582 = vmatpush1.msra.mxu0 0.0
      %583 = vmatprep.subr.mxu0 0.0
      %584 = vmatpush1.msra.mxu0 0.0
      %585 = vmatprep.mubr.f32.mxu0 0.0
      %586 = vmatmul.mubr.f32.gmra.mrb[0].mxu0 %v519
      %v587 = vpop.f32.mrb[0].mxu0
      %v588 = vadd.f32 0.0, %v587
      %v589 = vpop.f32.mrb[0].mxu0
      %590 = vdwg.mxu0
      %s591 = scalar_lea.vmem %s254, 8
      %592 = vst.msk [vmem:[%s591] sm:$0xff] %vm258, %v588
      %s593 = scalar_lea.vmem %s235, 16
      %v594 = vld [vmem:[%s593] sm:$0xff]
      %s595 = scalar_lea.vmem %s240, 16
      %v596 = vld [vmem:[%s595] sm:$0xff]
      %v598 = vsel %vm258, %v594, 0
      %v601 = vsel %vm258, %v596, 0
      %603 = vmatprep.subr.mxu0 0.0
      %604 = vmatpush1.xpose.msra.mxu0 %v601
      %605 = vmatprep.subr.mxu0 0.0
      %606 = vmatpush1.xpose.msra.mxu0 0.0
      %607 = vmatprep.subr.mxu0 0.0
      %608 = vmatpush1.xpose.msra.mxu0 0.0
      %609 = vmatprep.subr.mxu0 0.0
      %610 = vmatpush1.xpose.msra.mxu0 0.0
      %611 = vmatprep.subr.mxu0 0.0
      %612 = vmatpush1.xpose.msra.mxu0 0.0
      %613 = vmatprep.subr.mxu0 0.0
      %614 = vmatpush1.xpose.msra.mxu0 0.0
      %615 = vmatprep.subr.mxu0 0.0
      %616 = vmatpush1.xpose.msra.mxu0 0.0
      %617 = vmatprep.subr.mxu0 0.0
      %618 = vmatpush1.xpose.msra.mxu0 0.0
      %619 = vmatprep.subr.mxu0 0.0
      %620 = vmatpush1.xpose.msra.mxu0 0.0
      %621 = vmatprep.subr.mxu0 0.0
      %622 = vmatpush1.xpose.msra.mxu0 0.0
      %623 = vmatprep.subr.mxu0 0.0
      %624 = vmatpush1.xpose.msra.mxu0 0.0
      %625 = vmatprep.subr.mxu0 0.0
      %626 = vmatpush1.xpose.msra.mxu0 0.0
      %627 = vmatprep.subr.mxu0 0.0
      %628 = vmatpush1.xpose.msra.mxu0 0.0
      %629 = vmatprep.subr.mxu0 0.0
      %630 = vmatpush1.xpose.msra.mxu0 0.0
      %631 = vmatprep.subr.mxu0 0.0
      %632 = vmatpush1.xpose.msra.mxu0 0.0
      %633 = vmatprep.subr.mxu0 0.0
      %634 = vmatpush1.xpose.msra.mxu0 0.0
      %635 = vmatprep.subr.mxu0 0.0
      %636 = vmatpush1.xpose.msra.mxu0 0.0
      %637 = vmatprep.subr.mxu0 0.0
      %638 = vmatpush1.xpose.msra.mxu0 0.0
      %639 = vmatprep.subr.mxu0 0.0
      %640 = vmatpush1.xpose.msra.mxu0 0.0
      %641 = vmatprep.subr.mxu0 0.0
      %642 = vmatpush1.xpose.msra.mxu0 0.0
      %643 = vmatprep.subr.mxu0 0.0
      %644 = vmatpush1.xpose.msra.mxu0 0.0
      %645 = vmatprep.subr.mxu0 0.0
      %646 = vmatpush1.xpose.msra.mxu0 0.0
      %647 = vmatprep.subr.mxu0 0.0
      %648 = vmatpush1.xpose.msra.mxu0 0.0
      %649 = vmatprep.subr.mxu0 0.0
      %650 = vmatpush1.xpose.msra.mxu0 0.0
      %651 = vmatprep.subr.mxu0 0.0
      %652 = vmatpush1.xpose.msra.mxu0 0.0
      %653 = vmatprep.subr.mxu0 0.0
      %654 = vmatpush1.xpose.msra.mxu0 0.0
      %655 = vmatprep.subr.mxu0 0.0
      %656 = vmatpush1.xpose.msra.mxu0 0.0
      %657 = vmatprep.subr.mxu0 0.0
      %658 = vmatpush1.xpose.msra.mxu0 0.0
      %659 = vmatprep.subr.mxu0 0.0
      %660 = vmatpush1.xpose.msra.mxu0 0.0
      %661 = vmatprep.subr.mxu0 0.0
      %662 = vmatpush1.xpose.msra.mxu0 0.0
      %663 = vmatprep.subr.mxu0 0.0
      %664 = vmatpush1.xpose.msra.mxu0 0.0
      %665 = vmatprep.subr.mxu0 0.0
      %666 = vmatpush1.xpose.msra.mxu0 0.0
      %667 = vmatprep.mubr.f32.mxu0 0.0
      %668 = vmatmul.mubr.f32.gmra.mrb[0].mxu0 %v598
      %v669 = vpop.f32.mrb[0].mxu0
      %v670 = vadd.f32 0.0, %v669
      %v671 = vpop.f32.mrb[0].mxu0
      %672 = vdwg.mxu0
      %v673 = vmul.f32 %v670, 0.35355338
      %v674 = vadd.f32 %v673, %v255
      %v675 = vsel %vm258, %v674, -inf
      %676 = vmax.xlane.f32.xlu0 %v675
      %v677 = vpop.xlane.xlu0 %676
      %v678 = vsub.f32 %v674, %v677
      %v679 = vmul.f32 %v678, 1.442695
      %v680 = vpow.pop %v679
      %v681 = vsel %vm258, %v680, 0.0
      %682 = vadd.xlane.f32.xlu0 %v681
      %v683 = vpop.xlane.xlu0 %682
      %v684 = vrcp.pop %v683
      %v685 = vmul.f32 %v680, %v684
      %s686 = scalar_lea.vmem %s245, 16
      %v687 = vld [vmem:[%s686] sm:$0xff]
      %v689 = vsel %vm258, %v685, 0
      %691 = vmatprep.subr.mxu0 0.0
      %692 = vmatpush1.msra.mxu0 %v687
      %693 = vmatprep.subr.mxu0 0.0
      %694 = vmatpush1.msra.mxu0 0.0
      %695 = vmatprep.subr.mxu0 0.0
      %696 = vmatpush1.msra.mxu0 0.0
      %697 = vmatprep.subr.mxu0 0.0
      %698 = vmatpush1.msra.mxu0 0.0
      %699 = vmatprep.subr.mxu0 0.0
      %700 = vmatpush1.msra.mxu0 0.0
      %701 = vmatprep.subr.mxu0 0.0
      %702 = vmatpush1.msra.mxu0 0.0
      %703 = vmatprep.subr.mxu0 0.0
      %704 = vmatpush1.msra.mxu0 0.0
      %705 = vmatprep.subr.mxu0 0.0
      %706 = vmatpush1.msra.mxu0 0.0
      %707 = vmatprep.subr.mxu0 0.0
      %708 = vmatpush1.msra.mxu0 0.0
      %709 = vmatprep.subr.mxu0 0.0
      %710 = vmatpush1.msra.mxu0 0.0
      %711 = vmatprep.subr.mxu0 0.0
      %712 = vmatpush1.msra.mxu0 0.0
      %713 = vmatprep.subr.mxu0 0.0
      %714 = vmatpush1.msra.mxu0 0.0
      %715 = vmatprep.subr.mxu0 0.0
      %716 = vmatpush1.msra.mxu0 0.0
      %717 = vmatprep.subr.mxu0 0.0
      %718 = vmatpush1.msra.mxu0 0.0
      %719 = vmatprep.subr.mxu0 0.0
      %720 = vmatpush1.msra.mxu0 0.0
      %721 = vmatprep.subr.mxu0 0.0
      %722 = vmatpush1.msra.mxu0 0.0
      %723 = vmatprep.subr.mxu0 0.0
      %724 = vmatpush1.msra.mxu0 0.0
      %725 = vmatprep.subr.mxu0 0.0
      %726 = vmatpush1.msra.mxu0 0.0
      %727 = vmatprep.subr.mxu0 0.0
      %728 = vmatpush1.msra.mxu0 0.0
      %729 = vmatprep.subr.mxu0 0.0
      %730 = vmatpush1.msra.mxu0 0.0
      %731 = vmatprep.subr.mxu0 0.0
      %732 = vmatpush1.msra.mxu0 0.0
      %733 = vmatprep.subr.mxu0 0.0
      %734 = vmatpush1.msra.mxu0 0.0
      %735 = vmatprep.subr.mxu0 0.0
      %736 = vmatpush1.msra.mxu0 0.0
      %737 = vmatprep.subr.mxu0 0.0
      %738 = vmatpush1.msra.mxu0 0.0
      %739 = vmatprep.subr.mxu0 0.0
      %740 = vmatpush1.msra.mxu0 0.0
      %741 = vmatprep.subr.mxu0 0.0
      %742 = vmatpush1.msra.mxu0 0.0
      %743 = vmatprep.subr.mxu0 0.0
      %744 = vmatpush1.msra.mxu0 0.0
      %745 = vmatprep.subr.mxu0 0.0
      %746 = vmatpush1.msra.mxu0 0.0
      %747 = vmatprep.subr.mxu0 0.0
      %748 = vmatpush1.msra.mxu0 0.0
      %749 = vmatprep.subr.mxu0 0.0
      %750 = vmatpush1.msra.mxu0 0.0
      %751 = vmatprep.subr.mxu0 0.0
      %752 = vmatpush1.msra.mxu0 0.0
      %753 = vmatprep.subr.mxu0 0.0
      %754 = vmatpush1.msra.mxu0 0.0
      %755 = vmatprep.mubr.f32.mxu0 0.0
      %756 = vmatmul.mubr.f32.gmra.mrb[0].mxu0 %v689
      %v757 = vpop.f32.mrb[0].mxu0
      %v758 = vadd.f32 0.0, %v757
      %v759 = vpop.f32.mrb[0].mxu0
      %760 = vdwg.mxu0
      %s761 = scalar_lea.vmem %s254, 16
      %762 = vst.msk [vmem:[%s761] sm:$0xff] %vm258, %v758
      %s763 = scalar_lea.vmem %s235, 24
      %v764 = vld [vmem:[%s763] sm:$0xff]
      %s765 = scalar_lea.vmem %s240, 24
      %v766 = vld [vmem:[%s765] sm:$0xff]
      %v768 = vsel %vm258, %v764, 0
      %v771 = vsel %vm258, %v766, 0
      %773 = vmatprep.subr.mxu0 0.0
      %774 = vmatpush1.xpose.msra.mxu0 %v771
      %775 = vmatprep.subr.mxu0 0.0
      %776 = vmatpush1.xpose.msra.mxu0 0.0
      %777 = vmatprep.subr.mxu0 0.0
      %778 = vmatpush1.xpose.msra.mxu0 0.0
      %779 = vmatprep.subr.mxu0 0.0
      %780 = vmatpush1.xpose.msra.mxu0 0.0
      %781 = vmatprep.subr.mxu0 0.0
      %782 = vmatpush1.xpose.msra.mxu0 0.0
      %783 = vmatprep.subr.mxu0 0.0
      %784 = vmatpush1.xpose.msra.mxu0 0.0
      %785 = vmatprep.subr.mxu0 0.0
      %786 = vmatpush1.xpose.msra.mxu0 0.0
      %787 = vmatprep.subr.mxu0 0.0
      %788 = vmatpush1.xpose.msra.mxu0 0.0
      %789 = vmatprep.subr.mxu0 0.0
      %790 = vmatpush1.xpose.msra.mxu0 0.0
      %791 = vmatprep.subr.mxu0 0.0
      %792 = vmatpush1.xpose.msra.mxu0 0.0
      %793 = vmatprep.subr.mxu0 0.0
      %794 = vmatpush1.xpose.msra.mxu0 0.0
      %795 = vmatprep.subr.mxu0 0.0
      %796 = vmatpush1.xpose.msra.mxu0 0.0
      %797 = vmatprep.subr.mxu0 0.0
      %798 = vmatpush1.xpose.msra.mxu0 0.0
      %799 = vmatprep.subr.mxu0 0.0
      %800 = vmatpush1.xpose.msra.mxu0 0.0
      %801 = vmatprep.subr.mxu0 0.0
      %802 = vmatpush1.xpose.msra.mxu0 0.0
      %803 = vmatprep.subr.mxu0 0.0
      %804 = vmatpush1.xpose.msra.mxu0 0.0
      %805 = vmatprep.subr.mxu0 0.0
      %806 = vmatpush1.xpose.msra.mxu0 0.0
      %807 = vmatprep.subr.mxu0 0.0
      %808 = vmatpush1.xpose.msra.mxu0 0.0
      %809 = vmatprep.subr.mxu0 0.0
      %810 = vmatpush1.xpose.msra.mxu0 0.0
      %811 = vmatprep.subr.mxu0 0.0
      %812 = vmatpush1.xpose.msra.mxu0 0.0
      %813 = vmatprep.subr.mxu0 0.0
      %814 = vmatpush1.xpose.msra.mxu0 0.0
      %815 = vmatprep.subr.mxu0 0.0
      %816 = vmatpush1.xpose.msra.mxu0 0.0
      %817 = vmatprep.subr.mxu0 0.0
      %818 = vmatpush1.xpose.msra.mxu0 0.0
      %819 = vmatprep.subr.mxu0 0.0
      %820 = vmatpush1.xpose.msra.mxu0 0.0
      %821 = vmatprep.subr.mxu0 0.0
      %822 = vmatpush1.xpose.msra.mxu0 0.0
      %823 = vmatprep.subr.mxu0 0.0
      %824 = vmatpush1.xpose.msra.mxu0 0.0
      %825 = vmatprep.subr.mxu0 0.0
      %826 = vmatpush1.xpose.msra.mxu0 0.0
      %827 = vmatprep.subr.mxu0 0.0
      %828 = vmatpush1.xpose.msra.mxu0 0.0
      %829 = vmatprep.subr.mxu0 0.0
      %830 = vmatpush1.xpose.msra.mxu0 0.0
      %831 = vmatprep.subr.mxu0 0.0
      %832 = vmatpush1.xpose.msra.mxu0 0.0
      %833 = vmatprep.subr.mxu0 0.0
      %834 = vmatpush1.xpose.msra.mxu0 0.0
      %835 = vmatprep.subr.mxu0 0.0
      %836 = vmatpush1.xpose.msra.mxu0 0.0
      %837 = vmatprep.mubr.f32.mxu0 0.0
      %838 = vmatmul.mubr.f32.gmra.mrb[0].mxu0 %v768
      %v839 = vpop.f32.mrb[0].mxu0
      %v840 = vadd.f32 0.0, %v839
      %v841 = vpop.f32.mrb[0].mxu0
      %842 = vdwg.mxu0
      %v843 = vmul.f32 %v840, 0.35355338
      %v844 = vadd.f32 %v843, %v255
      %v845 = vsel %vm258, %v844, -inf
      %846 = vmax.xlane.f32.xlu0 %v845
      %v847 = vpop.xlane.xlu0 %846
      %v848 = vsub.f32 %v844, %v847
      %v849 = vmul.f32 %v848, 1.442695
      %v850 = vpow.pop %v849
      %v851 = vsel %vm258, %v850, 0.0
      %852 = vadd.xlane.f32.xlu0 %v851
      %v853 = vpop.xlane.xlu0 %852
      %v854 = vrcp.pop %v853
      %v855 = vmul.f32 %v850, %v854
      %s856 = scalar_lea.vmem %s245, 24
      %v857 = vld [vmem:[%s856] sm:$0xff]
      %v859 = vsel %vm258, %v855, 0
      %861 = vmatprep.subr.mxu0 0.0
      %862 = vmatpush1.msra.mxu0 %v857
      %863 = vmatprep.subr.mxu0 0.0
      %864 = vmatpush1.msra.mxu0 0.0
      %865 = vmatprep.subr.mxu0 0.0
      %866 = vmatpush1.msra.mxu0 0.0
      %867 = vmatprep.subr.mxu0 0.0
      %868 = vmatpush1.msra.mxu0 0.0
      %869 = vmatprep.subr.mxu0 0.0
      %870 = vmatpush1.msra.mxu0 0.0
      %871 = vmatprep.subr.mxu0 0.0
      %872 = vmatpush1.msra.mxu0 0.0
      %873 = vmatprep.subr.mxu0 0.0
      %874 = vmatpush1.msra.mxu0 0.0
      %875 = vmatprep.subr.mxu0 0.0
      %876 = vmatpush1.msra.mxu0 0.0
      %877 = vmatprep.subr.mxu0 0.0
      %878 = vmatpush1.msra.mxu0 0.0
      %879 = vmatprep.subr.mxu0 0.0
      %880 = vmatpush1.msra.mxu0 0.0
      %881 = vmatprep.subr.mxu0 0.0
      %882 = vmatpush1.msra.mxu0 0.0
      %883 = vmatprep.subr.mxu0 0.0
      %884 = vmatpush1.msra.mxu0 0.0
      %885 = vmatprep.subr.mxu0 0.0
      %886 = vmatpush1.msra.mxu0 0.0
      %887 = vmatprep.subr.mxu0 0.0
      %888 = vmatpush1.msra.mxu0 0.0
      %889 = vmatprep.subr.mxu0 0.0
      %890 = vmatpush1.msra.mxu0 0.0
      %891 = vmatprep.subr.mxu0 0.0
      %892 = vmatpush1.msra.mxu0 0.0
      %893 = vmatprep.subr.mxu0 0.0
      %894 = vmatpush1.msra.mxu0 0.0
      %895 = vmatprep.subr.mxu0 0.0
      %896 = vmatpush1.msra.mxu0 0.0
      %897 = vmatprep.subr.mxu0 0.0
      %898 = vmatpush1.msra.mxu0 0.0
      %899 = vmatprep.subr.mxu0 0.0
      %900 = vmatpush1.msra.mxu0 0.0
      %901 = vmatprep.subr.mxu0 0.0
      %902 = vmatpush1.msra.mxu0 0.0
      %903 = vmatprep.subr.mxu0 0.0
      %904 = vmatpush1.msra.mxu0 0.0
      %905 = vmatprep.subr.mxu0 0.0
      %906 = vmatpush1.msra.mxu0 0.0
      %907 = vmatprep.subr.mxu0 0.0
      %908 = vmatpush1.msra.mxu0 0.0
      %909 = vmatprep.subr.mxu0 0.0
      %910 = vmatpush1.msra.mxu0 0.0
      %911 = vmatprep.subr.mxu0 0.0
      %912 = vmatpush1.msra.mxu0 0.0
      %913 = vmatprep.subr.mxu0 0.0
      %914 = vmatpush1.msra.mxu0 0.0
      %915 = vmatprep.subr.mxu0 0.0
      %916 = vmatpush1.msra.mxu0 0.0
      %917 = vmatprep.subr.mxu0 0.0
      %918 = vmatpush1.msra.mxu0 0.0
      %919 = vmatprep.subr.mxu0 0.0
      %920 = vmatpush1.msra.mxu0 0.0
      %921 = vmatprep.subr.mxu0 0.0
      %922 = vmatpush1.msra.mxu0 0.0
      %923 = vmatprep.subr.mxu0 0.0
      %924 = vmatpush1.msra.mxu0 0.0
      %925 = vmatprep.mubr.f32.mxu0 0.0
      %926 = vmatmul.mubr.f32.gmra.mrb[0].mxu0 %v859
      %v927 = vpop.f32.mrb[0].mxu0
      %v928 = vadd.f32 0.0, %v927
      %v929 = vpop.f32.mrb[0].mxu0
      %930 = vdwg.mxu0
      %s931 = scalar_lea.vmem %s254, 24
      %932 = vst.msk [vmem:[%s931] sm:$0xff] %vm258, %v928
      %p933 = scmp.lt.s32.totalorder %s15, 1
      %s934 = scalar_select %p933, %s15, 1
      %s935 = smul.addr %s934, 4
      %s936 = smul.addr %s935, 8
      %s937 = scalar_lea.vmem %s4, %s936
      // Predicated region
      $region37: #{transformer_encoder_layer.5} parent=35 // pred_check
        %p938 = pneg %p137
      $region38: #{transformer_encoder_layer.5} parent=35 // pred_check_branch
        %940 = sbr.rel (%p938) target = $region40
      $region39: #{transformer_encoder_layer.5} parent=35 // pred_region
        _
      $region40: #{transformer_encoder_layer.5} parent=35 // pred_fallthru
        _
    $region36: #{transformer_encoder_layer.5} parent=5 // pred_fallthru
      _
    %p941 = scmp.le.s32.totalorder 2, %s10
    // Predicated region
    $region41: #{transformer_encoder_layer.5} parent=5 // pred_check
      %p942 = pneg %p941
    $region42: #{transformer_encoder_layer.5} parent=5 // pred_check_branch
      %944 = sbr.rel (%p942) target = $region44
    $region43: #{transformer_encoder_layer.5} parent=5 // pred_region
      %s945 = ssub.s32 %s10, 2
      // Predicated region
      $region45: #{transformer_encoder_layer.5} parent=43 // pred_check
        %p946 = pneg %p143
      $region46: #{transformer_encoder_layer.5} parent=43 // pred_check_branch
        %948 = sbr.rel (%p946) target = $region48
      $region47: #{transformer_encoder_layer.5} parent=43 // pred_region
        %p949 = scmp.lt.s32.totalorder %s16, 1
        %s950 = scalar_select %p949, %s16, 1
        %s951 = smul.addr %s950, 4
        %s952 = smul.addr %s951, 8
        %s953 = scalar_lea.vmem %s4, %s952
      $region48: #{transformer_encoder_layer.5} parent=43 // pred_fallthru
        _
    $region44: #{transformer_encoder_layer.5} parent=5 // pred_fallthru
      _
  $region6: #{transformer_encoder_layer.5} parent=0 // loop_footer
    %s14 = sadd.s32 1, %s10
  $region7: #{transformer_encoder_layer.5} parent=0 // loop_footer_branch
    %9 = sbr.rel target = $region3
  $region8: #{transformer_encoder_layer.5} parent=0 // loop_exit
    _

// kernel: transformer_encoder_layer.7
$region0: #{transformer_encoder_layer.7}
  #allocation0 [shape = 'u32[]', space=smem, size = 0x4, offset = 0x4, fixed_abs, tag = 'smem constant byte address 0x4 - core index']
  #allocation1 [shape = 'u32[144,128]{1,0:T(1,128)}', space=vmem, size = 0x12000, scoped, tag = 'internal scratch']
  #allocation2 [shape = 'f32[16,32]{1,0:T(8,128)}', space=vmem, size = 0x2000, scoped, tag = 'scratch operand']
  %s0 = inlined_call_operand.vmem [shape: f32[16,32], index: 0, kind: input, shape index: {}]
  %s1 = inlined_call_operand.vmem [shape: f32[32,64], index: 1, kind: input, shape index: {}]
  %s2 = inlined_call_operand.vmem [shape: f32[1,64], index: 2, kind: input, shape index: {}]
  %s3 = inlined_call_operand.vmem [shape: f32[64,32], index: 3, kind: input, shape index: {}]
  %s4 = inlined_call_operand.vmem [shape: f32[1,32], index: 4, kind: input, shape index: {}]
  %s5 = inlined_call_operand.vmem [shape: f32[1,32], index: 5, kind: input, shape index: {}]
  %s6 = inlined_call_operand.vmem [shape: f32[1,32], index: 6, kind: input, shape index: {}]
  %s7 = inlined_call_operand.hbm [shape: f32[16,32], index: 7, kind: output, shape index: {}]
  %s8 = sld [smem:[#allocation0]]
  $region46: #{transformer_encoder_layer.7} parent=0
    _
  %s10 = ssub.s32 1, %s8
  %s11 = scalar_select 0, %s10, %s8
  $region1: #{transformer_encoder_layer.7} parent=0
    #allocation3 [shape = 'u8[8192]{0}', space=vmem, size = 0x2000, scoped, tag = 'output window, operand 0, single buffered']
    #allocation4 [shape = 's32[1]{0}', space=sflag, size = 0x4, scoped, tag = 'scoped memory for transformer_encoder_layer.7']
    %12 = vsyncpa [#allocation4], 0
    // Predicated region
    $region2: #{transformer_encoder_layer.7} parent=1 // pred_check
      _
    $region3: #{transformer_encoder_layer.7} parent=1 // pred_check_branch
      %14 = sbr.rel (0) target = $region5
    $region4: #{transformer_encoder_layer.7} parent=1 // pred_region
      _
    $region5: #{transformer_encoder_layer.7} parent=1 // pred_fallthru
      _
    // Predicated region
    $region6: #{transformer_encoder_layer.7} parent=1 // pred_check
      _
    $region7: #{transformer_encoder_layer.7} parent=1 // pred_check_branch
      %16 = sbr.rel (0) target = $region9
    $region8: #{transformer_encoder_layer.7} parent=1 // pred_region
      _
    $region9: #{transformer_encoder_layer.7} parent=1 // pred_fallthru
      _
    // Predicated region
    $region10: #{transformer_encoder_layer.7} parent=1 // pred_check
      _
    $region11: #{transformer_encoder_layer.7} parent=1 // pred_check_branch
      %18 = sbr.rel (0) target = $region13
    $region12: #{transformer_encoder_layer.7} parent=1 // pred_region
      _
    $region13: #{transformer_encoder_layer.7} parent=1 // pred_fallthru
      _
    // Predicated region
    $region14: #{transformer_encoder_layer.7} parent=1 // pred_check
      _
    $region15: #{transformer_encoder_layer.7} parent=1 // pred_check_branch
      %20 = sbr.rel (0) target = $region17
    $region16: #{transformer_encoder_layer.7} parent=1 // pred_region
      _
    $region17: #{transformer_encoder_layer.7} parent=1 // pred_fallthru
      _
    // Predicated region
    $region18: #{transformer_encoder_layer.7} parent=1 // pred_check
      _
    $region19: #{transformer_encoder_layer.7} parent=1 // pred_check_branch
      %22 = sbr.rel (0) target = $region21
    $region20: #{transformer_encoder_layer.7} parent=1 // pred_region
      _
    $region21: #{transformer_encoder_layer.7} parent=1 // pred_fallthru
      _
    // Predicated region
    $region22: #{transformer_encoder_layer.7} parent=1 // pred_check
      _
    $region23: #{transformer_encoder_layer.7} parent=1 // pred_check_branch
      %24 = sbr.rel (0) target = $region25
    $region24: #{transformer_encoder_layer.7} parent=1 // pred_region
      _
    $region25: #{transformer_encoder_layer.7} parent=1 // pred_fallthru
      _
    // Predicated region
    $region26: #{transformer_encoder_layer.7} parent=1 // pred_check
      _
    $region27: #{transformer_encoder_layer.7} parent=1 // pred_check_branch
      %26 = sbr.rel (0) target = $region29
    $region28: #{transformer_encoder_layer.7} parent=1 // pred_region
      _
    $region29: #{transformer_encoder_layer.7} parent=1 // pred_fallthru
      _
    %p27 = scmp.eq.s32.totalorder 0, 0
    // Predicated region
    $region30: #{transformer_encoder_layer.7} parent=1 // pred_check
      %p28 = pneg %p27
    $region31: #{transformer_encoder_layer.7} parent=1 // pred_check_branch
      %30 = sbr.rel (%p28) target = $region33
    $region32: #{transformer_encoder_layer.7} parent=1 // pred_region
      %vm31 = vcmask 261120
      %32 = vst.msk [vmem:[#allocation2] sm:$0xff] %vm31, 0.0
      %33 = vst.msk [vmem:[#allocation2 + $0x8] sm:$0xff] %vm31, 0.0
    $region33: #{transformer_encoder_layer.7} parent=1 // pred_fallthru
      _
    %v34 = vld [vmem:[%s0] sm:$0xff]
    %v35 = vld [vmem:[%s0 + $0x8] sm:$0xff]
    %v36 = vld [vmem:[%s1] sm:$0xff]
    %v37 = vld [vmem:[%s1 + $0x8] sm:$0xff]
    %v38 = vld [vmem:[%s1 + $0x10] sm:$0xff]
    %v39 = vld [vmem:[%s1 + $0x18] sm:$0xff]
    %v40 = vld [vmem:[%s2] sm:$0x1]
    %v42 = vlaneseq
    %v43 = vshrl.u32 %v42, 7
    %v44 = vsub.s32 0, %v43
    %v45 = vrot.slane %v40, %v44
    %vm47 = vcmask 261120
    %v49 = vsel %vm47, %v34, 0
    %v52 = vsel %vm47, %v35, 0
    %54 = vmatprep.subr.mxu0 0.0
    %55 = vmatpush1.msra.mxu0 %v36
    %56 = vmatprep.subr.mxu0 0.0
    %57 = vmatpush1.msra.mxu0 %v37
    %58 = vmatprep.subr.mxu0 0.0
    %59 = vmatpush1.msra.mxu0 %v38
    %60 = vmatprep.subr.mxu0 0.0
    %61 = vmatpush1.msra.mxu0 %v39
    %62 = vmatprep.subr.mxu0 0.0
    %63 = vmatpush1.msra.mxu0 0.0
    %64 = vmatprep.subr.mxu0 0.0
    %65 = vmatpush1.msra.mxu0 0.0
    %66 = vmatprep.subr.mxu0 0.0
    %67 = vmatpush1.msra.mxu0 0.0
    %68 = vmatprep.subr.mxu0 0.0
    %69 = vmatpush1.msra.mxu0 0.0
    %70 = vmatprep.subr.mxu0 0.0
    %71 = vmatpush1.msra.mxu0 0.0
    %72 = vmatprep.subr.mxu0 0.0
    %73 = vmatpush1.msra.mxu0 0.0
    %74 = vmatprep.subr.mxu0 0.0
    %75 = vmatpush1.msra.mxu0 0.0
    %76 = vmatprep.subr.mxu0 0.0
    %77 = vmatpush1.msra.mxu0 0.0
    %78 = vmatprep.subr.mxu0 0.0
    %79 = vmatpush1.msra.mxu0 0.0
    %80 = vmatprep.subr.mxu0 0.0
    %81 = vmatpush1.msra.mxu0 0.0
    %82 = vmatprep.subr.mxu0 0.0
    %83 = vmatpush1.msra.mxu0 0.0
    %84 = vmatprep.subr.mxu0 0.0
    %85 = vmatpush1.msra.mxu0 0.0
    %86 = vmatprep.subr.mxu0 0.0
    %87 = vmatpush1.msra.mxu0 0.0
    %88 = vmatprep.subr.mxu0 0.0
    %89 = vmatpush1.msra.mxu0 0.0
    %90 = vmatprep.subr.mxu0 0.0
    %91 = vmatpush1.msra.mxu0 0.0
    %92 = vmatprep.subr.mxu0 0.0
    %93 = vmatpush1.msra.mxu0 0.0
    %94 = vmatprep.subr.mxu0 0.0
    %95 = vmatpush1.msra.mxu0 0.0
    %96 = vmatprep.subr.mxu0 0.0
    %97 = vmatpush1.msra.mxu0 0.0
    %98 = vmatprep.subr.mxu0 0.0
    %99 = vmatpush1.msra.mxu0 0.0
    %100 = vmatprep.subr.mxu0 0.0
    %101 = vmatpush1.msra.mxu0 0.0
    %102 = vmatprep.subr.mxu0 0.0
    %103 = vmatpush1.msra.mxu0 0.0
    %104 = vmatprep.subr.mxu0 0.0
    %105 = vmatpush1.msra.mxu0 0.0
    %106 = vmatprep.subr.mxu0 0.0
    %107 = vmatpush1.msra.mxu0 0.0
    %108 = vmatprep.subr.mxu0 0.0
    %109 = vmatpush1.msra.mxu0 0.0
    %110 = vmatprep.subr.mxu0 0.0
    %111 = vmatpush1.msra.mxu0 0.0
    %112 = vmatprep.subr.mxu0 0.0
    %113 = vmatpush1.msra.mxu0 0.0
    %114 = vmatprep.subr.mxu0 0.0
    %115 = vmatpush1.msra.mxu0 0.0
    %116 = vmatprep.subr.mxu0 0.0
    %117 = vmatpush1.msra.mxu0 0.0
    %118 = vmatprep.mubr.f32.mxu0 0.0
    %119 = vmatmul.mubr.f32.gmra.mrb[0].mxu0 %v49
    %v120 = vpop.f32.mrb[0].mxu0
    %v121 = vadd.f32 %v45, %v120
    %v122 = vpop.f32.mrb[0].mxu0
    %123 = vmatprep.mubr.f32.mxu0 0.0
    %124 = vmatmul.mubr.f32.gmra.mrb[0].mxu0 %v52
    %v125 = vpop.f32.mrb[0].mxu0
    %v126 = vadd.f32 %v45, %v125
    %v127 = vpop.f32.mrb[0].mxu0
    %128 = vdwg.mxu0
    %v129 = vmax.f32 %v121, 0.0
    %v130 = vmax.f32 %v126, 0.0
    %v131 = vld [vmem:[#allocation2] sm:$0xff]
    %v132 = vld [vmem:[#allocation2 + $0x8] sm:$0xff]
    %v133 = vld [vmem:[%s3] sm:$0xff]
    %v134 = vld [vmem:[%s3 + $0x8] sm:$0xff]
    %v135 = vld [vmem:[%s3 + $0x10] sm:$0xff]
    %v136 = vld [vmem:[%s3 + $0x18] sm:$0xff]
    %v137 = vld [vmem:[%s3 + $0x20] sm:$0xff]
    %v138 = vld [vmem:[%s3 + $0x28] sm:$0xff]
    %v139 = vld [vmem:[%s3 + $0x30] sm:$0xff]
    %v140 = vld [vmem:[%s3 + $0x38] sm:$0xff]
    %vm141 = vcmask 523264
    %v143 = vsel %vm141, %v129, 0
    %v146 = vsel %vm141, %v130, 0
    %148 = vmatprep.subr.mxu0 0.0
    %149 = vmatpush1.msra.mxu0 %v133
    %150 = vmatprep.subr.mxu0 0.0
    %151 = vmatpush1.msra.mxu0 %v134
    %152 = vmatprep.subr.mxu0 0.0
    %153 = vmatpush1.msra.mxu0 %v135
    %154 = vmatprep.subr.mxu0 0.0
    %155 = vmatpush1.msra.mxu0 %v136
    %156 = vmatprep.subr.mxu0 0.0
    %157 = vmatpush1.msra.mxu0 %v137
    %158 = vmatprep.subr.mxu0 0.0
    %159 = vmatpush1.msra.mxu0 %v138
    %160 = vmatprep.subr.mxu0 0.0
    %161 = vmatpush1.msra.mxu0 %v139
    %162 = vmatprep.subr.mxu0 0.0
    %163 = vmatpush1.msra.mxu0 %v140
    %164 = vmatprep.subr.mxu0 0.0
    %165 = vmatpush1.msra.mxu0 0.0
    %166 = vmatprep.subr.mxu0 0.0
    %167 = vmatpush1.msra.mxu0 0.0
    %168 = vmatprep.subr.mxu0 0.0
    %169 = vmatpush1.msra.mxu0 0.0
    %170 = vmatprep.subr.mxu0 0.0
    %171 = vmatpush1.msra.mxu0 0.0
    %172 = vmatprep.subr.mxu0 0.0
    %173 = vmatpush1.msra.mxu0 0.0
    %174 = vmatprep.subr.mxu0 0.0
    %175 = vmatpush1.msra.mxu0 0.0
    %176 = vmatprep.subr.mxu0 0.0
    %177 = vmatpush1.msra.mxu0 0.0
    %178 = vmatprep.subr.mxu0 0.0
    %179 = vmatpush1.msra.mxu0 0.0
    %180 = vmatprep.subr.mxu0 0.0
    %181 = vmatpush1.msra.mxu0 0.0
    %182 = vmatprep.subr.mxu0 0.0
    %183 = vmatpush1.msra.mxu0 0.0
    %184 = vmatprep.subr.mxu0 0.0
    %185 = vmatpush1.msra.mxu0 0.0
    %186 = vmatprep.subr.mxu0 0.0
    %187 = vmatpush1.msra.mxu0 0.0
    %188 = vmatprep.subr.mxu0 0.0
    %189 = vmatpush1.msra.mxu0 0.0
    %190 = vmatprep.subr.mxu0 0.0
    %191 = vmatpush1.msra.mxu0 0.0
    %192 = vmatprep.subr.mxu0 0.0
    %193 = vmatpush1.msra.mxu0 0.0
    %194 = vmatprep.subr.mxu0 0.0
    %195 = vmatpush1.msra.mxu0 0.0
    %196 = vmatprep.subr.mxu0 0.0
    %197 = vmatpush1.msra.mxu0 0.0
    %198 = vmatprep.subr.mxu0 0.0
    %199 = vmatpush1.msra.mxu0 0.0
    %200 = vmatprep.subr.mxu0 0.0
    %201 = vmatpush1.msra.mxu0 0.0
    %202 = vmatprep.subr.mxu0 0.0
    %203 = vmatpush1.msra.mxu0 0.0
    %204 = vmatprep.subr.mxu0 0.0
    %205 = vmatpush1.msra.mxu0 0.0
    %206 = vmatprep.subr.mxu0 0.0
    %207 = vmatpush1.msra.mxu0 0.0
    %208 = vmatprep.subr.mxu0 0.0
    %209 = vmatpush1.msra.mxu0 0.0
    %210 = vmatprep.subr.mxu0 0.0
    %211 = vmatpush1.msra.mxu0 0.0
    %212 = vmatprep.mubr.f32.mxu0 0.0
    %213 = vmatmul.mubr.f32.gmra.mrb[0].mxu0 %v143
    %v214 = vpop.f32.mrb[0].mxu0
    %v215 = vadd.f32 0.0, %v214
    %v216 = vpop.f32.mrb[0].mxu0
    %217 = vmatprep.mubr.f32.mxu0 0.0
    %218 = vmatmul.mubr.f32.gmra.mrb[0].mxu0 %v146
    %v219 = vpop.f32.mrb[0].mxu0
    %v220 = vadd.f32 0.0, %v219
    %v221 = vpop.f32.mrb[0].mxu0
    %222 = vdwg.mxu0
    %v223 = vadd.f32 %v131, %v215
    %v224 = vadd.f32 %v132, %v220
    %225 = vst.msk [vmem:[#allocation2] sm:$0xff] %vm47, %v223
    %226 = vst.msk [vmem:[#allocation2 + $0x8] sm:$0xff] %vm47, %v224
    // Predicated region
    $region34: #{transformer_encoder_layer.7} parent=1 // pred_check
      %p227 = pneg %p27
    $region35: #{transformer_encoder_layer.7} parent=1 // pred_check_branch
      %229 = sbr.rel (%p227) target = $region37
    $region36: #{transformer_encoder_layer.7} parent=1 // pred_region
      %v230 = vld [vmem:[#allocation2] sm:$0xff]
      %v231 = vld [vmem:[#allocation2 + $0x8] sm:$0xff]
      %v232 = vld [vmem:[%s4] sm:$0x1]
      %v234 = vlaneseq
      %v235 = vshrl.u32 %v234, 7
      %v236 = vsub.s32 0, %v235
      %v237 = vrot.slane %v232, %v236
      %v239 = vadd.f32 %v230, %v237
      %v240 = vadd.f32 %v231, %v237
      %v241 = vadd.f32 %v34, %v239
      %v242 = vadd.f32 %v35, %v240
      %v243 = vsel %vm47, %v241, 0.0
      %244 = vadd.xlane.f32.xlu0 %v243
      %v245 = vpop.xlane.xlu0 %244
      %v246 = vsel %vm47, %v242, 0.0
      %247 = vadd.xlane.f32.xlu0 %v246
      %v248 = vpop.xlane.xlu0 %247
      %v249 = vrcp.pop 32.0
      %v250 = vmul.f32 %v245, %v249
      %v251 = vmul.f32 %v248, %v249
      %v252 = vsub.f32 %v241, %v250
      %v253 = vsub.f32 %v242, %v251
      %v254 = vmul.f32 %v252, %v252
      %v255 = vmul.f32 %v253, %v253
      %v256 = vsel %vm47, %v254, 0.0
      %257 = vadd.xlane.f32.xlu0 %v256
      %v258 = vpop.xlane.xlu0 %257
      %v259 = vsel %vm47, %v255, 0.0
      %260 = vadd.xlane.f32.xlu0 %v259
      %v261 = vpop.xlane.xlu0 %260
      %v262 = vmul.f32 %v258, %v249
      %v263 = vmul.f32 %v261, %v249
      %v264 = vadd.f32 %v262, 1e-06
      %v265 = vadd.f32 %v263, 1e-06
      %v266 = vrsqrt.pop %v264
      %v267 = vrsqrt.pop %v265
      %v268 = vmul.f32 %v252, %v266
      %v269 = vmul.f32 %v253, %v267
      %v270 = vld [vmem:[%s5] sm:$0x1]
      %v272 = vlaneseq
      %v273 = vshrl.u32 %v272, 7
      %v274 = vsub.s32 0, %v273
      %v275 = vrot.slane %v270, %v274
      %v277 = vmul.f32 %v268, %v275
      %v278 = vmul.f32 %v269, %v275
      %v279 = vld [vmem:[%s6] sm:$0x1]
      %v281 = vlaneseq
      %v282 = vshrl.u32 %v281, 7
      %v283 = vsub.s32 0, %v282
      %v284 = vrot.slane %v279, %v283
      %v286 = vadd.f32 %v277, %v284
      %v287 = vadd.f32 %v278, %v284
      %288 = vst.msk [vmem:[#allocation3] sm:$0xff] %vm47, %v286
      %289 = vst.msk [vmem:[#allocation3 + $0x8] sm:$0xff] %vm47, %v287
    $region37: #{transformer_encoder_layer.7} parent=1 // pred_fallthru
      _
    // Predicated region
    $region38: #{transformer_encoder_layer.7} parent=1 // pred_check
      _
    $region39: #{transformer_encoder_layer.7} parent=1 // pred_check_branch
      %291 = sbr.rel (0) target = $region41
    $region40: #{transformer_encoder_layer.7} parent=1 // pred_region
      %s293 = ssub.s32 256, 256
      %294 = vsyncadd [#allocation4], %s293
      %s295 = sshll.u32 [#allocation3], 4
      %s296 = int_to_ptr.vmem [resolvable:$true] %s295
      %301 = dma.vmem_to_hbm [thread:$0]  %s296, 256, %s7, [#allocation4], 128, 128, 8
    $region41: #{transformer_encoder_layer.7} parent=1 // pred_fallthru
      _
    // Predicated region
    $region42: #{transformer_encoder_layer.7} parent=1 // pred_check
      _
    $region43: #{transformer_encoder_layer.7} parent=1 // pred_check_branch
      %303 = sbr.rel (0) target = $region45
    $region44: #{transformer_encoder_layer.7} parent=1 // pred_region
      %304 = dma.done [#allocation4], 256
    $region45: #{transformer_encoder_layer.7} parent=1 // pred_fallthru
      _
    %305 = vsyncpa [#allocation4], 1

</llo_original>
